<compile_context>
chip_gen: v7x
topology: tpu7x:2x2x1
jax: 0.10.0
libtpu: 0.0.40
codegen_flags: <defaults>
</compile_context>

<pallas_src>
import jax
import jax.numpy as jnp
from jax.experimental import pallas as pl
from jax.experimental.pallas import tpu as pltpu


def _gradient_model_kernel(grad_ref, w3_ref, t4_ref, w2_ref, t1_ref, w1_ref,
                           out_ref):
    """Fused backward chain for one batch tile.

    grad_ref : (TM, D_OUT)  f32   incoming gradient tile
    w3_ref   : (D_OUT, H2)  bf16  weight of Linear(H2->D_OUT) (torch layout)
    t4_ref   : (TM, H2)     f32   tanh(pre) of 2nd Tanh (memory[4], stored as tanh)
    w2_ref   : (H2, H1)     bf16  weight of Linear(H1->H2)
    t1_ref   : (TM, H1)     f32   tanh(pre) of 1st Tanh (memory[1], stored as tanh)
    w1_ref   : (H1, D_IN)   bf16  weight of Linear(D_IN->H1)
    out_ref  : (TM, D_IN)   f32   gradient w.r.t. model input
    """
    g = grad_ref[...]

    # backward of Linear(H2 -> D_OUT): g @ W3   (bf16 MXU operands, f32 acc)
    g = jnp.dot(g.astype(jnp.bfloat16), w3_ref[...],
                preferred_element_type=jnp.float32)

    # backward of Tanh (idx 4): g * (1 - tanh(pre)^2)  — tanh precomputed
    t = t4_ref[...]
    g = g * (1.0 - t * t)

    # backward of Linear(H1 -> H2): g @ W2
    g = jnp.dot(g.astype(jnp.bfloat16), w2_ref[...],
                preferred_element_type=jnp.float32)

    # backward of Dropout (eval mode): identity

    # backward of Tanh (idx 1): g * (1 - tanh(pre)^2)
    t = t1_ref[...]
    g = g * (1.0 - t * t)

    # backward of Linear(D_IN -> H1): g @ W1
    out_ref[...] = jnp.dot(g.astype(jnp.bfloat16), w1_ref[...],
                           preferred_element_type=jnp.float32
                           ).astype(out_ref.dtype)


def gradient_model_forward(gradients, w1, w2, w3, tanh1, tanh4, *, tm=128):
    """Pallas implementation of GradientModelInputs.forward (layer_idx=0).

    gradients : (N, D_OUT) f32 — input to the backward pass
    w1/w2/w3  : torch-layout (out_features, in_features) weights, f32
    tanh1/tanh4 : tanh of the inputs to the two Tanh layers (hook memory,
                  stored as tanh values so the kernel needs no transcendentals)
    """
    n, d_out = gradients.shape
    h1, d_in = w1.shape
    h2, _ = w2.shape
    assert w2.shape == (h2, h1) and w3.shape == (d_out, h2)
    assert n % tm == 0, f"batch {n} must be a multiple of tile {tm}"

    # bf16 MXU operands (weights are grid-invariant and resident per tile).
    w1b = w1.astype(jnp.bfloat16)
    w2b = w2.astype(jnp.bfloat16)
    w3b = w3.astype(jnp.bfloat16)

    flops = 2 * n * (d_out * h2 + h2 * h1 + h1 * d_in)
    bytes_accessed = (
        (gradients.size + tanh1.size + tanh4.size + n * d_in) * 4  # f32 tensors
        + (w1.size + w2.size + w3.size) * 2                        # bf16 weights
    )

    grid = (n // tm,)  # even number of parallel steps -> both v7x TCs busy
    return pl.pallas_call(
        _gradient_model_kernel,
        out_shape=jax.ShapeDtypeStruct((n, d_in), jnp.float32),
        grid=grid,
        in_specs=[
            pl.BlockSpec((tm, d_out), lambda i: (i, 0)),   # gradient tile
            pl.BlockSpec((d_out, h2), lambda i: (0, 0)),   # W3 (full, resident)
            pl.BlockSpec((tm, h2), lambda i: (i, 0)),      # tanh (idx 4) tile
            pl.BlockSpec((h2, h1), lambda i: (0, 0)),      # W2 (full, resident)
            pl.BlockSpec((tm, h1), lambda i: (i, 0)),      # tanh (idx 1) tile
            pl.BlockSpec((h1, d_in), lambda i: (0, 0)),    # W1 (full, resident)
        ],
        out_specs=pl.BlockSpec((tm, d_in), lambda i: (i, 0)),
        compiler_params=pltpu.CompilerParams(
            dimension_semantics=("parallel",)),
        cost_estimate=pl.CostEstimate(
            flops=flops, transcendentals=0, bytes_accessed=bytes_accessed),
    )(gradients, w3b, tanh4, w2b, tanh1, w1b)


def _model_forward_and_memory(x, w1, w2, w3):
    """Plain-JAX forward of the underlying model (the `update()` glue).

    Instead of storing the pre-tanh activations (as the PyTorch hooks do) we
    store the tanh *values* — they are already computed in the forward pass and
    let the backward kernel avoid all in-kernel transcendentals."""
    pre1 = x @ w1.T            # input to first Tanh (memory[1])
    t1 = jnp.tanh(pre1)
    a1 = t1                    # Dropout (eval) = identity
    pre4 = a1 @ w2.T           # input to second Tanh (memory[4])
    t4 = jnp.tanh(pre4)
    out = t4 @ w3.T
    return out, t1, t4


def _reference_backward_f32(gradients, w1, w2, w3, t1, t4):
    """Pure-f32 JAX reference of GradientModelInputs.forward (module semantics)."""
    g = gradients @ w3
    g = g * (1.0 - t4 * t4)
    g = g @ w2
    g = g * (1.0 - t1 * t1)
    g = g @ w1
    return g


def _reference_backward_mixed(gradients, w1, w2, w3, t1, t4):
    """JAX reference mirroring the kernel's bf16-operand / f32-accumulate matmuls."""
    bf = jnp.bfloat16
    g = jnp.dot(gradients.astype(bf), w3.astype(bf),
                preferred_element_type=jnp.float32)
    g = g * (1.0 - t4 * t4)
    g = jnp.dot(g.astype(bf), w2.astype(bf), preferred_element_type=jnp.float32)
    g = g * (1.0 - t1 * t1)
    g = jnp.dot(g.astype(bf), w1.astype(bf), preferred_element_type=jnp.float32)
    return g


if __name__ == "__main__":
    # Small but lane-dense shapes (all feature dims multiples of 128).
    N, D_IN, H1, H2, D_OUT = 256, 128, 256, 256, 128
    TM = 128

    key = jax.random.PRNGKey(0)
    k_x, k_g, k_w1, k_w2, k_w3 = jax.random.split(key, 5)

    # Deterministic synthetic parameters (torch Linear layout: (out, in)).
    w1 = jax.random.normal(k_w1, (H1, D_IN), jnp.float32) * 0.1
    w2 = jax.random.normal(k_w2, (H2, H1), jnp.float32) * 0.1
    w3 = jax.random.normal(k_w3, (D_OUT, H2), jnp.float32) * 0.1

    # Example input and initial gradient (input to the backward pass).
    x = jax.random.normal(k_x, (N, D_IN), jnp.float32)
    gradients = jax.random.normal(k_g, (N, D_OUT), jnp.float32)

    # `update(image)`: run underlying model forward, fill hook memory.
    _, t1, t4 = _model_forward_and_memory(x, w1, w2, w3)

    # GradientModelInputs.forward(gradients) — the fused Pallas kernel.
    out = gradient_model_forward(gradients, w1, w2, w3, t1, t4, tm=TM)
    out = jax.block_until_ready(out)
    assert out.shape == (N, D_IN)

    # Check against a reference that mirrors the kernel's mixed precision ...
    ref_mixed = _reference_backward_mixed(gradients, w1, w2, w3, t1, t4)
    assert jnp.allclose(out, ref_mixed, atol=2e-3, rtol=2e-3), \
        float(jnp.max(jnp.abs(out - ref_mixed)))

    # ... and against the full-f32 semantics of the module (bf16 MXU tolerance).
    ref_f32 = _reference_backward_f32(gradients, w1, w2, w3, t1, t4)
    assert jnp.allclose(out, ref_f32, atol=5e-2, rtol=5e-2), \
        float(jnp.max(jnp.abs(out - ref_f32)))

    print("KERNEL_OK")
</pallas_src>

<mosaic_0001>
module attributes {stable_mosaic.version = 11 : i64} {
  func.func @_gradient_model_kernel(%arg0: i32, %arg1: memref<128x128xf32, #tpu.memory_space<vmem>>, %arg2: memref<128x256xbf16, #tpu.memory_space<vmem>>, %arg3: memref<128x256xf32, #tpu.memory_space<vmem>>, %arg4: memref<256x256xbf16, #tpu.memory_space<vmem>>, %arg5: memref<128x256xf32, #tpu.memory_space<vmem>>, %arg6: memref<256x128xbf16, #tpu.memory_space<vmem>>, %arg7: memref<128x128xf32, #tpu.memory_space<vmem>>) attributes {dimension_semantics = [#tpu.dimension_semantics<parallel>], iteration_bounds = array<i64: 2>, scalar_prefetch = 0 : i64, scratch_operands = 0 : i64, tpu.core_type = #tpu.core_type<tc>, window_params = [{transform_indices = @transform_0, window_bounds = array<i64: 128, 128>}, {pipeline_mode = #tpu.pipeline_mode<synchronous>, transform_indices = @transform_1, window_bounds = array<i64: 128, 256>}, {transform_indices = @transform_2, window_bounds = array<i64: 128, 256>}, {pipeline_mode = #tpu.pipeline_mode<synchronous>, transform_indices = @transform_3, window_bounds = array<i64: 256, 256>}, {transform_indices = @transform_4, window_bounds = array<i64: 128, 256>}, {pipeline_mode = #tpu.pipeline_mode<synchronous>, transform_indices = @transform_5, window_bounds = array<i64: 256, 128>}, {transform_indices = @transform_6, window_bounds = array<i64: 128, 128>}]} {
    %c0 = arith.constant 0 : index
    %c0_0 = arith.constant 0 : index
    %0 = vector.load %arg1[%c0, %c0_0] : memref<128x128xf32, #tpu.memory_space<vmem>>, vector<128x128xf32>
    %1 = arith.truncf %0 : vector<128x128xf32> to vector<128x128xbf16>
    %c0_1 = arith.constant 0 : index
    %c0_2 = arith.constant 0 : index
    %2 = vector.load %arg2[%c0_1, %c0_2] : memref<128x256xbf16, #tpu.memory_space<vmem>>, vector<128x256xbf16>
    %cst = arith.constant dense<0.000000e+00> : vector<128x256xf32>
    %3 = tpu.matmul %1, %2, %cst {dimension_numbers = #tpu.dot_dimension_numbers<[1], [0], [0], [1], [0, 0, 1, 1], [], []>} : vector<128x128xbf16>, vector<128x256xbf16>, vector<128x256xf32> -> vector<128x256xf32>
    %c0_3 = arith.constant 0 : index
    %c0_4 = arith.constant 0 : index
    %4 = vector.load %arg3[%c0_3, %c0_4] : memref<128x256xf32, #tpu.memory_space<vmem>>, vector<128x256xf32>
    %5 = arith.mulf %4, %4 : vector<128x256xf32>
    %cst_5 = arith.constant 1.000000e+00 : f32
    %6 = vector.broadcast %cst_5 : f32 to vector<128x256xf32>
    %7 = arith.subf %6, %5 : vector<128x256xf32>
    %8 = arith.mulf %3, %7 : vector<128x256xf32>
    %9 = arith.truncf %8 : vector<128x256xf32> to vector<128x256xbf16>
    %c0_6 = arith.constant 0 : index
    %c0_7 = arith.constant 0 : index
    %10 = vector.load %arg4[%c0_6, %c0_7] : memref<256x256xbf16, #tpu.memory_space<vmem>>, vector<256x256xbf16>
    %cst_8 = arith.constant dense<0.000000e+00> : vector<128x256xf32>
    %11 = tpu.matmul %9, %10, %cst_8 {dimension_numbers = #tpu.dot_dimension_numbers<[1], [0], [0], [1], [0, 0, 1, 1], [], []>} : vector<128x256xbf16>, vector<256x256xbf16>, vector<128x256xf32> -> vector<128x256xf32>
    %c0_9 = arith.constant 0 : index
    %c0_10 = arith.constant 0 : index
    %12 = vector.load %arg5[%c0_9, %c0_10] : memref<128x256xf32, #tpu.memory_space<vmem>>, vector<128x256xf32>
    %13 = arith.mulf %12, %12 : vector<128x256xf32>
    %cst_11 = arith.constant 1.000000e+00 : f32
    %14 = vector.broadcast %cst_11 : f32 to vector<128x256xf32>
    %15 = arith.subf %14, %13 : vector<128x256xf32>
    %16 = arith.mulf %11, %15 : vector<128x256xf32>
    %17 = arith.truncf %16 : vector<128x256xf32> to vector<128x256xbf16>
    %c0_12 = arith.constant 0 : index
    %c0_13 = arith.constant 0 : index
    %18 = vector.load %arg6[%c0_12, %c0_13] : memref<256x128xbf16, #tpu.memory_space<vmem>>, vector<256x128xbf16>
    %cst_14 = arith.constant dense<0.000000e+00> : vector<128x128xf32>
    %19 = tpu.matmul %17, %18, %cst_14 {dimension_numbers = #tpu.dot_dimension_numbers<[1], [0], [0], [1], [0, 0, 1, 1], [], []>} : vector<128x256xbf16>, vector<256x128xbf16>, vector<128x128xf32> -> vector<128x128xf32>
    %c0_15 = arith.constant 0 : index
    %c0_16 = arith.constant 0 : index
    %20 = vector.load %arg7[%c0_15, %c0_16] : memref<128x128xf32, #tpu.memory_space<vmem>>, vector<128x128xf32>
    tpu.vector_store %arg7[%c0_15, %c0_16], %19 {strides = array<i32>} : memref<128x128xf32, #tpu.memory_space<vmem>>, vector<128x128xf32>,
    return
  }
  func.func @transform_0(%arg0: i32) -> (i32, i32) {
    %c0_i32 = arith.constant 0 : i32
    %c0_i32_0 = arith.constant 0 : i32
    return %arg0, %c0_i32 : i32, i32
  }
  func.func @transform_1(%arg0: i32) -> (i32, i32) {
    %c0_i32 = arith.constant 0 : i32
    %c0_i32_0 = arith.constant 0 : i32
    %c0_i32_1 = arith.constant 0 : i32
    return %c0_i32, %c0_i32_0 : i32, i32
  }
  func.func @transform_2(%arg0: i32) -> (i32, i32) {
    %c0_i32 = arith.constant 0 : i32
    %c0_i32_0 = arith.constant 0 : i32
    return %arg0, %c0_i32 : i32, i32
  }
  func.func @transform_3(%arg0: i32) -> (i32, i32) {
    %c0_i32 = arith.constant 0 : i32
    %c0_i32_0 = arith.constant 0 : i32
    %c0_i32_1 = arith.constant 0 : i32
    return %c0_i32, %c0_i32_0 : i32, i32
  }
  func.func @transform_4(%arg0: i32) -> (i32, i32) {
    %c0_i32 = arith.constant 0 : i32
    %c0_i32_0 = arith.constant 0 : i32
    return %arg0, %c0_i32 : i32, i32
  }
  func.func @transform_5(%arg0: i32) -> (i32, i32) {
    %c0_i32 = arith.constant 0 : i32
    %c0_i32_0 = arith.constant 0 : i32
    %c0_i32_1 = arith.constant 0 : i32
    return %c0_i32, %c0_i32_0 : i32, i32
  }
  func.func @transform_6(%arg0: i32) -> (i32, i32) {
    %c0_i32 = arith.constant 0 : i32
    %c0_i32_0 = arith.constant 0 : i32
    return %arg0, %c0_i32 : i32, i32
  }
}

</mosaic_0001>

<llo_original>
// kernel: tpu_custom_call.1
$region0: #{tpu_custom_call.1}
  #allocation0 [shape = 'u32[]', space=smem, size = 0x4, offset = 0x4, fixed_abs, tag = 'smem constant byte address 0x4 - core index']
  #allocation1 [shape = 'u32[144,128]{1,0:T(1,128)}', space=vmem, size = 0x12000, scoped, tag = 'internal scratch']
  %s0 = inlined_call_operand.hbm [shape: f32[256,128], index: 0, kind: input, shape index: {}]
  %s1 = inlined_call_operand.hbm [shape: bf16[128,256], index: 1, kind: input, shape index: {}]
  %s2 = inlined_call_operand.hbm [shape: f32[256,256], index: 2, kind: input, shape index: {}]
  %s3 = inlined_call_operand.hbm [shape: bf16[256,256], index: 3, kind: input, shape index: {}]
  %s4 = inlined_call_operand.hbm [shape: f32[256,256], index: 4, kind: input, shape index: {}]
  %s5 = inlined_call_operand.hbm [shape: bf16[256,128], index: 5, kind: input, shape index: {}]
  %s6 = inlined_call_operand.hbm [shape: f32[256,128], index: 6, kind: output, shape index: {}]
  %s7 = sld [smem:[#allocation0]]
  $region81: #{tpu_custom_call.1} parent=0
    _
  %s9 = ssub.s32 1, %s7
  %s10 = scalar_select 0, %s9, %s7
  $region1: #{tpu_custom_call.1} parent=0
    #allocation2 [shape = 'u8[131072]{0}', space=vmem, size = 0x20000, scoped, tag = 'input window, operand 0']
    #allocation3 [shape = 's32[2]{0}', space=sflag, size = 0x8, scoped, tag = 'scoped memory for tpu_custom_call.1']
    #allocation4 [shape = 's32[2]{0}', space=sflag, size = 0x8, scoped, tag = 'scoped memory for tpu_custom_call.1']
    #allocation5 [shape = 'u8[65536]{0}', space=vmem, size = 0x10000, scoped, tag = 'input window, operand 1, single buffered']
    #allocation6 [shape = 's32[1]{0}', space=sflag, size = 0x4, scoped, tag = 'scoped memory for tpu_custom_call.1']
    #allocation7 [shape = 'u8[262144]{0}', space=vmem, size = 0x40000, scoped, tag = 'input window, operand 2']
    #allocation8 [shape = 'u8[131072]{0}', space=vmem, size = 0x20000, scoped, tag = 'input window, operand 3, single buffered']
    #allocation9 [shape = 'u8[262144]{0}', space=vmem, size = 0x40000, scoped, tag = 'input window, operand 4']
    #allocation10 [shape = 's32[2]{0}', space=sflag, size = 0x8, scoped, tag = 'scoped memory for tpu_custom_call.1']
    #allocation11 [shape = 'u8[65536]{0}', space=vmem, size = 0x10000, scoped, tag = 'input window, operand 5, single buffered']
    #allocation12 [shape = 'u8[131072]{0}', space=vmem, size = 0x20000, scoped, tag = 'output window, operand 0']
    %11 = vsyncpa [#allocation3], 0
    %s12 = scalar_lea.sflag [#allocation3], 1
    %13 = vsyncpa %s12, 0
    %14 = vsyncpa [#allocation6], 0
    %15 = vsyncpa [#allocation10], 0
    %s16 = scalar_lea.sflag [#allocation10], 1
    %17 = vsyncpa %s16, 0
    %18 = vsyncpa [#allocation4], 0
    %s19 = scalar_lea.sflag [#allocation4], 1
    %20 = vsyncpa %s19, 0
    loop: start=0, step=1, limit=4
    $region2: #{tpu_custom_call.1} parent=1 // loop_pre_header
      _
    $region3: #{tpu_custom_call.1} parent=1 // loop_header
      %s22 = sphi 0, %s26
      %p23 = scmp.ge.s32.totalorder %s22, 4
      %s32 = sphi 0, %s34
      %s35 = sphi 0, %s32
      %s36 = sphi 0, %s35
      %s52 = sphi 0, %s36
      %s56 = sphi 0, %s56
      %s58 = sphi 0, %s56
      %s59 = sphi 0, %s58
      %s73 = sphi 0, %s59
      %s79 = sphi 0, %s81
      %s82 = sphi 0, %s79
      %s83 = sphi 0, %s82
      %s99 = sphi 0, %s83
      %s103 = sphi 0, %s103
      %s105 = sphi 0, %s103
      %s106 = sphi 0, %s105
      %s120 = sphi 0, %s106
      %s126 = sphi 0, %s128
      %s129 = sphi 0, %s126
      %s130 = sphi 0, %s129
      %s146 = sphi 0, %s130
      %s150 = sphi 0, %s150
      %s152 = sphi 0, %s150
      %s153 = sphi 0, %s152
      %s167 = sphi 0, %s153
      %s173 = sphi 0, %s175
      %s176 = sphi 0, %s173
      %s177 = sphi 0, %s176
      %s193 = sphi 0, %s177
    $region4: #{tpu_custom_call.1} parent=1 // loop_header_branch
      %25 = sbr.rel (%p23) target = $region8
    $region5: #{tpu_custom_call.1} parent=1 // loop_body
      %s27 = ssub.s32 %s22, 1
      %s28 = ssub.s32 %s22, 2
      %s29 = sadd.s32 %s22, 1
      %s30 = ssub.s32 %s22, %s29
      %p31 = scmp.eq.s32.totalorder %s30, 0
      %s33 = sadd.s32 %s32, 1
      %s34 = scalar_select %p31, %s32, %s33
      %p37 = pneg %p31
      %p38 = scmp.eq.s32.totalorder %s22, 1
      %p39 = por %p37, %p38
      %p40 = scmp.ne.s32.totalorder %s32, %s35
      %p41 = scmp.eq.s32.totalorder %s22, 0
      %p42 = por %p40, %p41
      %p43 = scmp.ne.s32.totalorder %s32, %s35
      %p44 = scmp.eq.s32.totalorder %s27, 1
      %p45 = por %p43, %p44
      %p46 = scmp.ne.s32.totalorder %s35, %s36
      %p47 = scmp.eq.s32.totalorder %s27, 0
      %p48 = por %p46, %p47
      %p49 = scmp.ne.s32.totalorder %s35, %s36
      %p50 = scmp.eq.s32.totalorder %s28, 1
      %p51 = por %p49, %p50
      %p53 = scmp.ne.s32.totalorder %s36, %s52
      %p54 = scmp.eq.s32.totalorder %s28, 0
      %p55 = por %p53, %p54
      %s57 = sadd.s32 %s56, 1
      %p60 = scmp.eq.s32.totalorder %s22, 1
      %p61 = scmp.ne.s32.totalorder %s56, %s58
      %p62 = scmp.eq.s32.totalorder %s22, 0
      %p63 = por %p61, %p62
      %p64 = scmp.ne.s32.totalorder %s56, %s58
      %p65 = scmp.eq.s32.totalorder %s27, 1
      %p66 = por %p64, %p65
      %p67 = scmp.ne.s32.totalorder %s58, %s59
      %p68 = scmp.eq.s32.totalorder %s27, 0
      %p69 = por %p67, %p68
      %p70 = scmp.ne.s32.totalorder %s58, %s59
      %p71 = scmp.eq.s32.totalorder %s28, 1
      %p72 = por %p70, %p71
      %p74 = scmp.ne.s32.totalorder %s59, %s73
      %p75 = scmp.eq.s32.totalorder %s28, 0
      %p76 = por %p74, %p75
      %s77 = ssub.s32 %s22, %s29
      %p78 = scmp.eq.s32.totalorder %s77, 0
      %s80 = sadd.s32 %s79, 1
      %s81 = scalar_select %p78, %s79, %s80
      %p84 = pneg %p78
      %p85 = scmp.eq.s32.totalorder %s22, 1
      %p86 = por %p84, %p85
      %p87 = scmp.ne.s32.totalorder %s79, %s82
      %p88 = scmp.eq.s32.totalorder %s22, 0
      %p89 = por %p87, %p88
      %p90 = scmp.ne.s32.totalorder %s79, %s82
      %p91 = scmp.eq.s32.totalorder %s27, 1
      %p92 = por %p90, %p91
      %p93 = scmp.ne.s32.totalorder %s82, %s83
      %p94 = scmp.eq.s32.totalorder %s27, 0
      %p95 = por %p93, %p94
      %p96 = scmp.ne.s32.totalorder %s82, %s83
      %p97 = scmp.eq.s32.totalorder %s28, 1
      %p98 = por %p96, %p97
      %p100 = scmp.ne.s32.totalorder %s83, %s99
      %p101 = scmp.eq.s32.totalorder %s28, 0
      %p102 = por %p100, %p101
      %s104 = sadd.s32 %s103, 1
      %p107 = scmp.eq.s32.totalorder %s22, 1
      %p108 = scmp.ne.s32.totalorder %s103, %s105
      %p109 = scmp.eq.s32.totalorder %s22, 0
      %p110 = por %p108, %p109
      %p111 = scmp.ne.s32.totalorder %s103, %s105
      %p112 = scmp.eq.s32.totalorder %s27, 1
      %p113 = por %p111, %p112
      %p114 = scmp.ne.s32.totalorder %s105, %s106
      %p115 = scmp.eq.s32.totalorder %s27, 0
      %p116 = por %p114, %p115
      %p117 = scmp.ne.s32.totalorder %s105, %s106
      %p118 = scmp.eq.s32.totalorder %s28, 1
      %p119 = por %p117, %p118
      %p121 = scmp.ne.s32.totalorder %s106, %s120
      %p122 = scmp.eq.s32.totalorder %s28, 0
      %p123 = por %p121, %p122
      %s124 = ssub.s32 %s22, %s29
      %p125 = scmp.eq.s32.totalorder %s124, 0
      %s127 = sadd.s32 %s126, 1
      %s128 = scalar_select %p125, %s126, %s127
      %p131 = pneg %p125
      %p132 = scmp.eq.s32.totalorder %s22, 1
      %p133 = por %p131, %p132
      %p134 = scmp.ne.s32.totalorder %s126, %s129
      %p135 = scmp.eq.s32.totalorder %s22, 0
      %p136 = por %p134, %p135
      %p137 = scmp.ne.s32.totalorder %s126, %s129
      %p138 = scmp.eq.s32.totalorder %s27, 1
      %p139 = por %p137, %p138
      %p140 = scmp.ne.s32.totalorder %s129, %s130
      %p141 = scmp.eq.s32.totalorder %s27, 0
      %p142 = por %p140, %p141
      %p143 = scmp.ne.s32.totalorder %s129, %s130
      %p144 = scmp.eq.s32.totalorder %s28, 1
      %p145 = por %p143, %p144
      %p147 = scmp.ne.s32.totalorder %s130, %s146
      %p148 = scmp.eq.s32.totalorder %s28, 0
      %p149 = por %p147, %p148
      %s151 = sadd.s32 %s150, 1
      %p154 = scmp.eq.s32.totalorder %s22, 1
      %p155 = scmp.ne.s32.totalorder %s150, %s152
      %p156 = scmp.eq.s32.totalorder %s22, 0
      %p157 = por %p155, %p156
      %p158 = scmp.ne.s32.totalorder %s150, %s152
      %p159 = scmp.eq.s32.totalorder %s27, 1
      %p160 = por %p158, %p159
      %p161 = scmp.ne.s32.totalorder %s152, %s153
      %p162 = scmp.eq.s32.totalorder %s27, 0
      %p163 = por %p161, %p162
      %p164 = scmp.ne.s32.totalorder %s152, %s153
      %p165 = scmp.eq.s32.totalorder %s28, 1
      %p166 = por %p164, %p165
      %p168 = scmp.ne.s32.totalorder %s153, %s167
      %p169 = scmp.eq.s32.totalorder %s28, 0
      %p170 = por %p168, %p169
      %s171 = ssub.s32 %s22, %s29
      %p172 = scmp.eq.s32.totalorder %s171, 0
      %s174 = sadd.s32 %s173, 1
      %s175 = scalar_select %p172, %s173, %s174
      %p178 = pneg %p172
      %p179 = scmp.eq.s32.totalorder %s22, 1
      %p180 = por %p178, %p179
      %p181 = scmp.ne.s32.totalorder %s173, %s176
      %p182 = scmp.eq.s32.totalorder %s22, 0
      %p183 = por %p181, %p182
      %p184 = scmp.ne.s32.totalorder %s173, %s176
      %p185 = scmp.eq.s32.totalorder %s27, 1
      %p186 = por %p184, %p185
      %p187 = scmp.ne.s32.totalorder %s176, %s177
      %p188 = scmp.eq.s32.totalorder %s27, 0
      %p189 = por %p187, %p188
      %p190 = scmp.ne.s32.totalorder %s176, %s177
      %p191 = scmp.eq.s32.totalorder %s28, 1
      %p192 = por %p190, %p191
      %p194 = scmp.ne.s32.totalorder %s177, %s193
      %p195 = scmp.eq.s32.totalorder %s28, 0
      %p196 = por %p194, %p195
      %p197 = scmp.le.s32.totalorder 1, %s22
      %p198 = scmp.lt.s32.totalorder %s22, 3
      %p199 = pnand %p197, %p198
      %p200 = pneg %p199
      // Predicated region
      $region9: #{tpu_custom_call.1} parent=5 // pred_check
        _
      $region10: #{tpu_custom_call.1} parent=5 // pred_check_branch
        %202 = sbr.rel (%p199) target = $region12
      $region11: #{tpu_custom_call.1} parent=5 // pred_region
        %s203 = ssub.s32 %s22, 1
        // Predicated region
        $region13: #{tpu_custom_call.1} parent=11 // pred_check
          %p204 = pneg %p69
        $region14: #{tpu_custom_call.1} parent=11 // pred_check_branch
          %206 = sbr.rel (%p204) target = $region16
        $region15: #{tpu_custom_call.1} parent=11 // pred_region
          %s208 = ssub.s32 2048, 2048
          %209 = vsyncadd [#allocation6], %s208
          %s210 = sshll.u32 [#allocation5], 4
          %s211 = int_to_ptr.vmem [resolvable:$true] %s210
          %216 = dma.hbm_to_vmem [thread:$0]  %s1, 2048, %s211, [#allocation6], 128, 128, 8
        $region16: #{tpu_custom_call.1} parent=11 // pred_fallthru
          _
        // Predicated region
        $region17: #{tpu_custom_call.1} parent=11 // pred_check
          %p217 = pneg %p116
        $region18: #{tpu_custom_call.1} parent=11 // pred_check_branch
          %219 = sbr.rel (%p217) target = $region20
        $region19: #{tpu_custom_call.1} parent=11 // pred_region
          %s221 = ssub.s32 4096, 4096
          %222 = vsyncadd [#allocation6], %s221
          %s223 = sshll.u32 [#allocation8], 4
          %s224 = int_to_ptr.vmem [resolvable:$true] %s223
          %229 = dma.hbm_to_vmem [thread:$0]  %s3, 4096, %s224, [#allocation6], 128, 128, 8
        $region20: #{tpu_custom_call.1} parent=11 // pred_fallthru
          _
        // Predicated region
        $region21: #{tpu_custom_call.1} parent=11 // pred_check
          %p230 = pneg %p163
        $region22: #{tpu_custom_call.1} parent=11 // pred_check_branch
          %232 = sbr.rel (%p230) target = $region24
        $region23: #{tpu_custom_call.1} parent=11 // pred_region
          %s234 = ssub.s32 2048, 2048
          %235 = vsyncadd [#allocation10], %s234
          %s236 = sshll.u32 [#allocation11], 4
          %s237 = int_to_ptr.vmem [resolvable:$true] %s236
          %242 = dma.hbm_to_vmem [thread:$0]  %s5, 2048, %s237, [#allocation10], 64, 64, 4
        $region24: #{tpu_custom_call.1} parent=11 // pred_fallthru
          _
      $region12: #{tpu_custom_call.1} parent=5 // pred_fallthru
        _
      %p243 = scmp.lt.s32.totalorder %s22, 2
      // Predicated region
      $region25: #{tpu_custom_call.1} parent=5 // pred_check
        %p244 = pneg %p243
      $region26: #{tpu_custom_call.1} parent=5 // pred_check_branch
        %246 = sbr.rel (%p244) target = $region28
      $region27: #{tpu_custom_call.1} parent=5 // pred_region
        // Predicated region
        $region29: #{tpu_custom_call.1} parent=27 // pred_check
          %p247 = pneg %p42
        $region30: #{tpu_custom_call.1} parent=27 // pred_check_branch
          %249 = sbr.rel (%p247) target = $region32
        $region31: #{tpu_custom_call.1} parent=27 // pred_region
          %s250 = sand.u32 %s22, 1
          %s251 = scalar_lea.sflag [#allocation3], %s250
          %s252 = sand.u32 %s32, 1
          %s253 = smul.addr %s252, 128
          %s254 = scalar_lea.vmem [#allocation2], %s253
          %s255 = smul.u32 16, %s22
          %s257 = ssub.s32 2048, 2048
          %258 = vsyncadd %s251, %s257
          %s259 = smul.addr %s255, 128
          %s260 = scalar_lea.hbm %s0, %s259
          %s261 = sshll.u32 %s254, 4
          %s262 = int_to_ptr.vmem [resolvable:$true] %s261
          %267 = dma.hbm_to_vmem [thread:$0]  %s260, 2048, %s262, %s251, 128, 128, 8
        $region32: #{tpu_custom_call.1} parent=27 // pred_fallthru
          _
        // Predicated region
        $region33: #{tpu_custom_call.1} parent=27 // pred_check
          %p268 = pneg %p89
        $region34: #{tpu_custom_call.1} parent=27 // pred_check_branch
          %270 = sbr.rel (%p268) target = $region36
        $region35: #{tpu_custom_call.1} parent=27 // pred_region
          %s271 = sand.u32 %s22, 1
          %s272 = scalar_lea.sflag [#allocation3], %s271
          %s273 = sand.u32 %s79, 1
          %s274 = smul.addr %s273, 256
          %s275 = scalar_lea.vmem [#allocation7], %s274
          %s276 = smul.u32 16, %s22
          %s278 = ssub.s32 4096, 4096
          %279 = vsyncadd %s272, %s278
          %s280 = smul.addr %s276, 2
          %s281 = smul.addr %s280, 128
          %s282 = scalar_lea.hbm %s2, %s281
          %s283 = sshll.u32 %s275, 4
          %s284 = int_to_ptr.vmem [resolvable:$true] %s283
          %289 = dma.hbm_to_vmem [thread:$0]  %s282, 4096, %s284, %s272, 256, 256, 16
        $region36: #{tpu_custom_call.1} parent=27 // pred_fallthru
          _
        // Predicated region
        $region37: #{tpu_custom_call.1} parent=27 // pred_check
          %p290 = pneg %p136
        $region38: #{tpu_custom_call.1} parent=27 // pred_check_branch
          %292 = sbr.rel (%p290) target = $region40
        $region39: #{tpu_custom_call.1} parent=27 // pred_region
          %s293 = sand.u32 %s22, 1
          %s294 = scalar_lea.sflag [#allocation10], %s293
          %s295 = sand.u32 %s126, 1
          %s296 = smul.addr %s295, 256
          %s297 = scalar_lea.vmem [#allocation9], %s296
          %s298 = smul.u32 16, %s22
          %s300 = ssub.s32 4096, 4096
          %301 = vsyncadd %s294, %s300
          %s302 = smul.addr %s298, 2
          %s303 = smul.addr %s302, 128
          %s304 = scalar_lea.hbm %s4, %s303
          %s305 = sshll.u32 %s297, 4
          %s306 = int_to_ptr.vmem [resolvable:$true] %s305
          %311 = dma.hbm_to_vmem [thread:$0]  %s304, 4096, %s306, %s294, 256, 256, 16
        $region40: #{tpu_custom_call.1} parent=27 // pred_fallthru
          _
      $region28: #{tpu_custom_call.1} parent=5 // pred_fallthru
        _
      %p312 = scmp.le.s32.totalorder 1, %s22
      %p313 = scmp.lt.s32.totalorder %s22, 3
      %p314 = pnand %p312, %p313
      %p315 = pneg %p314
      // Predicated region
      $region41: #{tpu_custom_call.1} parent=5 // pred_check
        _
      $region42: #{tpu_custom_call.1} parent=5 // pred_check_branch
        %317 = sbr.rel (%p314) target = $region44
      $region43: #{tpu_custom_call.1} parent=5 // pred_region
        %s318 = ssub.s32 %s22, 1
        %s319 = sand.u32 %s27, 1
        %s320 = scalar_lea.sflag [#allocation3], %s319
        %s321 = sand.u32 %s35, 1
        %s322 = smul.addr %s321, 128
        %s323 = scalar_lea.vmem [#allocation2], %s322
        // Predicated region
        $region45: #{tpu_custom_call.1} parent=43 // pred_check
          %p324 = pneg %p48
        $region46: #{tpu_custom_call.1} parent=43 // pred_check_branch
          %326 = sbr.rel (%p324) target = $region48
        $region47: #{tpu_custom_call.1} parent=43 // pred_region
          %327 = dma.done %s320, 2048
        $region48: #{tpu_custom_call.1} parent=43 // pred_fallthru
          _
        // Predicated region
        $region49: #{tpu_custom_call.1} parent=43 // pred_check
          %p328 = pneg %p69
        $region50: #{tpu_custom_call.1} parent=43 // pred_check_branch
          %330 = sbr.rel (%p328) target = $region52
        $region51: #{tpu_custom_call.1} parent=43 // pred_region
          %331 = dma.done [#allocation6], 2048
        $region52: #{tpu_custom_call.1} parent=43 // pred_fallthru
          _
        %s332 = sand.u32 %s27, 1
        %s333 = scalar_lea.sflag [#allocation3], %s332
        %s334 = sand.u32 %s82, 1
        %s335 = smul.addr %s334, 256
        %s336 = scalar_lea.vmem [#allocation7], %s335
        // Predicated region
        $region53: #{tpu_custom_call.1} parent=43 // pred_check
          %p337 = pneg %p95
        $region54: #{tpu_custom_call.1} parent=43 // pred_check_branch
          %339 = sbr.rel (%p337) target = $region56
        $region55: #{tpu_custom_call.1} parent=43 // pred_region
          %340 = dma.done %s333, 4096
        $region56: #{tpu_custom_call.1} parent=43 // pred_fallthru
          _
        // Predicated region
        $region57: #{tpu_custom_call.1} parent=43 // pred_check
          %p341 = pneg %p116
        $region58: #{tpu_custom_call.1} parent=43 // pred_check_branch
          %343 = sbr.rel (%p341) target = $region60
        $region59: #{tpu_custom_call.1} parent=43 // pred_region
          %344 = dma.done [#allocation6], 4096
        $region60: #{tpu_custom_call.1} parent=43 // pred_fallthru
          _
        %s345 = sand.u32 %s27, 1
        %s346 = scalar_lea.sflag [#allocation10], %s345
        %s347 = sand.u32 %s129, 1
        %s348 = smul.addr %s347, 256
        %s349 = scalar_lea.vmem [#allocation9], %s348
        // Predicated region
        $region61: #{tpu_custom_call.1} parent=43 // pred_check
          %p350 = pneg %p142
        $region62: #{tpu_custom_call.1} parent=43 // pred_check_branch
          %352 = sbr.rel (%p350) target = $region64
        $region63: #{tpu_custom_call.1} parent=43 // pred_region
          %353 = dma.done %s346, 4096
        $region64: #{tpu_custom_call.1} parent=43 // pred_fallthru
          _
        // Predicated region
        $region65: #{tpu_custom_call.1} parent=43 // pred_check
          %p354 = pneg %p163
        $region66: #{tpu_custom_call.1} parent=43 // pred_check_branch
          %356 = sbr.rel (%p354) target = $region68
        $region67: #{tpu_custom_call.1} parent=43 // pred_region
          %357 = dma.done [#allocation10], 2048
        $region68: #{tpu_custom_call.1} parent=43 // pred_fallthru
          _
        %s358 = sand.u32 %s27, 1
        %s359 = scalar_lea.sflag [#allocation3], %s358
        %s360 = sand.u32 %s35, 1
        %s361 = smul.addr %s360, 128
        %s362 = scalar_lea.vmem [#allocation2], %s361
        %p363 = pneg %p48
        %p364 = pneg %p45
        %p365 = pneg %p69
        %p366 = pneg %p66
        %s367 = sand.u32 %s27, 1
        %s368 = scalar_lea.sflag [#allocation3], %s367
        %s369 = sand.u32 %s82, 1
        %s370 = smul.addr %s369, 256
        %s371 = scalar_lea.vmem [#allocation7], %s370
        %p372 = pneg %p95
        %p373 = pneg %p92
        %p374 = pneg %p116
        %p375 = pneg %p113
        %s376 = sand.u32 %s27, 1
        %s377 = scalar_lea.sflag [#allocation10], %s376
        %s378 = sand.u32 %s129, 1
        %s379 = smul.addr %s378, 256
        %s380 = scalar_lea.vmem [#allocation9], %s379
        %p381 = pneg %p142
        %p382 = pneg %p139
        %p383 = pneg %p163
        %p384 = pneg %p160
        %p385 = pneg %p189
        %p386 = pneg %p186
        %s387 = sand.u32 %s176, 1
        %s388 = scalar_lea.sflag [#allocation4], %s387
        %s389 = sand.u32 %s176, 1
        %s390 = smul.addr %s389, 128
        %s391 = scalar_lea.vmem [#allocation12], %s390
        %s392 = smul.u32 16, %s27
        %s393 = smul.u32 16, %s27
        %s394 = smul.u32 16, %s27
        %s395 = smul.u32 16, %s27
        %v397 = vld [vmem:[%s323] sm:$0xff]
        %v398 = vld [vmem:[%s323 + $0x8] sm:$0xff]
        %v399 = vld [vmem:[%s323 + $0x10] sm:$0xff]
        %v400 = vld [vmem:[%s323 + $0x18] sm:$0xff]
        %v401 = vld [vmem:[%s323 + $0x20] sm:$0xff]
        %v402 = vld [vmem:[%s323 + $0x28] sm:$0xff]
        %v403 = vld [vmem:[%s323 + $0x30] sm:$0xff]
        %v404 = vld [vmem:[%s323 + $0x38] sm:$0xff]
        %v405 = vld [vmem:[%s323 + $0x40] sm:$0xff]
        %v406 = vld [vmem:[%s323 + $0x48] sm:$0xff]
        %v407 = vld [vmem:[%s323 + $0x50] sm:$0xff]
        %v408 = vld [vmem:[%s323 + $0x58] sm:$0xff]
        %v409 = vld [vmem:[%s323 + $0x60] sm:$0xff]
        %v410 = vld [vmem:[%s323 + $0x68] sm:$0xff]
        %v411 = vld [vmem:[%s323 + $0x70] sm:$0xff]
        %v412 = vld [vmem:[%s323 + $0x78] sm:$0xff]
        %v413 = vpack.c.bf16 %v398, %v397
        %v414 = vpack.c.bf16 %v400, %v399
        %v415 = vpack.c.bf16 %v402, %v401
        %v416 = vpack.c.bf16 %v404, %v403
        %v417 = vpack.c.bf16 %v406, %v405
        %v418 = vpack.c.bf16 %v408, %v407
        %v419 = vpack.c.bf16 %v410, %v409
        %v420 = vpack.c.bf16 %v412, %v411
        %v421 = vld [vmem:[#allocation5] sm:$0xff]
        %v422 = vld [vmem:[#allocation5 + $0x8] sm:$0xff]
        %v423 = vld [vmem:[#allocation5 + $0x10] sm:$0xff]
        %v424 = vld [vmem:[#allocation5 + $0x18] sm:$0xff]
        %v425 = vld [vmem:[#allocation5 + $0x20] sm:$0xff]
        %v426 = vld [vmem:[#allocation5 + $0x28] sm:$0xff]
        %v427 = vld [vmem:[#allocation5 + $0x30] sm:$0xff]
        %v428 = vld [vmem:[#allocation5 + $0x38] sm:$0xff]
        %v429 = vld [vmem:[#allocation5 + $0x40] sm:$0xff]
        %v430 = vld [vmem:[#allocation5 + $0x48] sm:$0xff]
        %v431 = vld [vmem:[#allocation5 + $0x50] sm:$0xff]
        %v432 = vld [vmem:[#allocation5 + $0x58] sm:$0xff]
        %v433 = vld [vmem:[#allocation5 + $0x60] sm:$0xff]
        %v434 = vld [vmem:[#allocation5 + $0x68] sm:$0xff]
        %v435 = vld [vmem:[#allocation5 + $0x70] sm:$0xff]
        %v436 = vld [vmem:[#allocation5 + $0x78] sm:$0xff]
        %v453 = vunpack.c.l.b16 %v421
        %v454 = vunpack.c.h.b16 %v421
        %v455 = vunpack.c.l.b16 %v422
        %v456 = vunpack.c.h.b16 %v422
        %v457 = vunpack.c.l.b16 %v423
        %v458 = vunpack.c.h.b16 %v423
        %v459 = vunpack.c.l.b16 %v424
        %v460 = vunpack.c.h.b16 %v424
        %v461 = vunpack.c.l.b16 %v425
        %v462 = vunpack.c.h.b16 %v425
        %v463 = vunpack.c.l.b16 %v426
        %v464 = vunpack.c.h.b16 %v426
        %v465 = vunpack.c.l.b16 %v427
        %v466 = vunpack.c.h.b16 %v427
        %v467 = vunpack.c.l.b16 %v428
        %v468 = vunpack.c.h.b16 %v428
        %v469 = vunpack.c.l.b16 %v429
        %v470 = vunpack.c.h.b16 %v429
        %v471 = vunpack.c.l.b16 %v430
        %v472 = vunpack.c.h.b16 %v430
        %v473 = vunpack.c.l.b16 %v431
        %v474 = vunpack.c.h.b16 %v431
        %v475 = vunpack.c.l.b16 %v432
        %v476 = vunpack.c.h.b16 %v432
        %v477 = vunpack.c.l.b16 %v433
        %v478 = vunpack.c.h.b16 %v433
        %v479 = vunpack.c.l.b16 %v434
        %v480 = vunpack.c.h.b16 %v434
        %v481 = vunpack.c.l.b16 %v435
        %v482 = vunpack.c.h.b16 %v435
        %v483 = vunpack.c.l.b16 %v436
        %v484 = vunpack.c.h.b16 %v436
        %v485 = vpack.c.b16 %v455, %v453
        %v486 = vpack.c.b16 %v456, %v454
        %v487 = vpack.c.b16 %v459, %v457
        %v488 = vpack.c.b16 %v460, %v458
        %v489 = vpack.c.b16 %v463, %v461
        %v490 = vpack.c.b16 %v464, %v462
        %v491 = vpack.c.b16 %v467, %v465
        %v492 = vpack.c.b16 %v468, %v466
        %v493 = vpack.c.b16 %v471, %v469
        %v494 = vpack.c.b16 %v472, %v470
        %v495 = vpack.c.b16 %v475, %v473
        %v496 = vpack.c.b16 %v476, %v474
        %v497 = vpack.c.b16 %v479, %v477
        %v498 = vpack.c.b16 %v480, %v478
        %v499 = vpack.c.b16 %v483, %v481
        %v500 = vpack.c.b16 %v484, %v482
        %517 = vmatprep.subr.bf16.mxu0 %v486
        %518 = vmatpush1.bf16.msra.mxu0 %v485
        %519 = vmatprep.subr.bf16.mxu0 %v488
        %520 = vmatpush1.bf16.msra.mxu0 %v487
        %521 = vmatprep.subr.bf16.mxu0 %v490
        %522 = vmatpush1.bf16.msra.mxu0 %v489
        %523 = vmatprep.subr.bf16.mxu0 %v492
        %524 = vmatpush1.bf16.msra.mxu0 %v491
        %525 = vmatprep.subr.bf16.mxu0 %v494
        %526 = vmatpush1.bf16.msra.mxu0 %v493
        %527 = vmatprep.subr.bf16.mxu0 %v496
        %528 = vmatpush1.bf16.msra.mxu0 %v495
        %529 = vmatprep.subr.bf16.mxu0 %v498
        %530 = vmatpush1.bf16.msra.mxu0 %v497
        %531 = vmatprep.subr.bf16.mxu0 %v500
        %532 = vmatpush1.bf16.msra.mxu0 %v499
        %533 = vmatprep.subr.bf16.mxu0 0
        %534 = vmatpush1.bf16.msra.mxu0 0
        %535 = vmatprep.subr.bf16.mxu0 0
        %536 = vmatpush1.bf16.msra.mxu0 0
        %537 = vmatprep.subr.bf16.mxu0 0
        %538 = vmatpush1.bf16.msra.mxu0 0
        %539 = vmatprep.subr.bf16.mxu0 0
        %540 = vmatpush1.bf16.msra.mxu0 0
        %541 = vmatprep.subr.bf16.mxu0 0
        %542 = vmatpush1.bf16.msra.mxu0 0
        %543 = vmatprep.subr.bf16.mxu0 0
        %544 = vmatpush1.bf16.msra.mxu0 0
        %545 = vmatprep.subr.bf16.mxu0 0
        %546 = vmatpush1.bf16.msra.mxu0 0
        %547 = vmatprep.subr.bf16.mxu0 0
        %548 = vmatpush1.bf16.msra.mxu0 0
        %549 = vmatprep.mubr.bf16.mxu0 0
        %550 = vmatmul.mubr.bf16.gmra.mrb[0].mxu0 %v413
        %v551 = vpop.f32.mrb[0].mxu0
        %v552 = vadd.f32 0.0, %v551
        %v553 = vpop.f32.mrb[0].mxu0
        %v554 = vadd.f32 0.0, %v553
        %v555 = vpop.f32.mrb[0].mxu0
        %v556 = vadd.f32 0.0, %v555
        %v557 = vpop.f32.mrb[0].mxu0
        %v558 = vadd.f32 0.0, %v557
        %559 = vmatprep.mubr.bf16.mxu0 0
        %560 = vmatmul.mubr.bf16.gmra.mrb[0].mxu0 %v414
        %v561 = vpop.f32.mrb[0].mxu0
        %v562 = vadd.f32 0.0, %v561
        %v563 = vpop.f32.mrb[0].mxu0
        %v564 = vadd.f32 0.0, %v563
        %v565 = vpop.f32.mrb[0].mxu0
        %v566 = vadd.f32 0.0, %v565
        %v567 = vpop.f32.mrb[0].mxu0
        %v568 = vadd.f32 0.0, %v567
        %569 = vmatprep.mubr.bf16.mxu0 0
        %570 = vmatmul.mubr.bf16.gmra.mrb[0].mxu0 %v415
        %v571 = vpop.f32.mrb[0].mxu0
        %v572 = vadd.f32 0.0, %v571
        %v573 = vpop.f32.mrb[0].mxu0
        %v574 = vadd.f32 0.0, %v573
        %v575 = vpop.f32.mrb[0].mxu0
        %v576 = vadd.f32 0.0, %v575
        %v577 = vpop.f32.mrb[0].mxu0
        %v578 = vadd.f32 0.0, %v577
        %579 = vmatprep.mubr.bf16.mxu0 0
        %580 = vmatmul.mubr.bf16.gmra.mrb[0].mxu0 %v416
        %v581 = vpop.f32.mrb[0].mxu0
        %v582 = vadd.f32 0.0, %v581
        %v583 = vpop.f32.mrb[0].mxu0
        %v584 = vadd.f32 0.0, %v583
        %v585 = vpop.f32.mrb[0].mxu0
        %v586 = vadd.f32 0.0, %v585
        %v587 = vpop.f32.mrb[0].mxu0
        %v588 = vadd.f32 0.0, %v587
        %589 = vmatprep.mubr.bf16.mxu0 0
        %590 = vmatmul.mubr.bf16.gmra.mrb[0].mxu0 %v417
        %v591 = vpop.f32.mrb[0].mxu0
        %v592 = vadd.f32 0.0, %v591
        %v593 = vpop.f32.mrb[0].mxu0
        %v594 = vadd.f32 0.0, %v593
        %v595 = vpop.f32.mrb[0].mxu0
        %v596 = vadd.f32 0.0, %v595
        %v597 = vpop.f32.mrb[0].mxu0
        %v598 = vadd.f32 0.0, %v597
        %599 = vmatprep.mubr.bf16.mxu0 0
        %600 = vmatmul.mubr.bf16.gmra.mrb[0].mxu0 %v418
        %v601 = vpop.f32.mrb[0].mxu0
        %v602 = vadd.f32 0.0, %v601
        %v603 = vpop.f32.mrb[0].mxu0
        %v604 = vadd.f32 0.0, %v603
        %v605 = vpop.f32.mrb[0].mxu0
        %v606 = vadd.f32 0.0, %v605
        %v607 = vpop.f32.mrb[0].mxu0
        %v608 = vadd.f32 0.0, %v607
        %609 = vmatprep.mubr.bf16.mxu0 0
        %610 = vmatmul.mubr.bf16.gmra.mrb[0].mxu0 %v419
        %v611 = vpop.f32.mrb[0].mxu0
        %v612 = vadd.f32 0.0, %v611
        %v613 = vpop.f32.mrb[0].mxu0
        %v614 = vadd.f32 0.0, %v613
        %v615 = vpop.f32.mrb[0].mxu0
        %v616 = vadd.f32 0.0, %v615
        %v617 = vpop.f32.mrb[0].mxu0
        %v618 = vadd.f32 0.0, %v617
        %619 = vmatprep.mubr.bf16.mxu0 0
        %620 = vmatmul.mubr.bf16.gmra.mrb[0].mxu0 %v420
        %v621 = vpop.f32.mrb[0].mxu0
        %v622 = vadd.f32 0.0, %v621
        %v623 = vpop.f32.mrb[0].mxu0
        %v624 = vadd.f32 0.0, %v623
        %v625 = vpop.f32.mrb[0].mxu0
        %v626 = vadd.f32 0.0, %v625
        %v627 = vpop.f32.mrb[0].mxu0
        %v628 = vadd.f32 0.0, %v627
        %629 = vdwg.mxu0
        %v630 = vld [vmem:[%s336] sm:$0xff]
        %v631 = vld [vmem:[%s336 + $0x8] sm:$0xff]
        %v632 = vld [vmem:[%s336 + $0x10] sm:$0xff]
        %v633 = vld [vmem:[%s336 + $0x18] sm:$0xff]
        %v634 = vld [vmem:[%s336 + $0x20] sm:$0xff]
        %v635 = vld [vmem:[%s336 + $0x28] sm:$0xff]
        %v636 = vld [vmem:[%s336 + $0x30] sm:$0xff]
        %v637 = vld [vmem:[%s336 + $0x38] sm:$0xff]
        %v638 = vld [vmem:[%s336 + $0x40] sm:$0xff]
        %v639 = vld [vmem:[%s336 + $0x48] sm:$0xff]
        %v640 = vld [vmem:[%s336 + $0x50] sm:$0xff]
        %v641 = vld [vmem:[%s336 + $0x58] sm:$0xff]
        %v642 = vld [vmem:[%s336 + $0x60] sm:$0xff]
        %v643 = vld [vmem:[%s336 + $0x68] sm:$0xff]
        %v644 = vld [vmem:[%s336 + $0x70] sm:$0xff]
        %v645 = vld [vmem:[%s336 + $0x78] sm:$0xff]
        %v646 = vld [vmem:[%s336 + $0x80] sm:$0xff]
        %v647 = vld [vmem:[%s336 + $0x88] sm:$0xff]
        %v648 = vld [vmem:[%s336 + $0x90] sm:$0xff]
        %v649 = vld [vmem:[%s336 + $0x98] sm:$0xff]
        %v650 = vld [vmem:[%s336 + $0xa0] sm:$0xff]
        %v651 = vld [vmem:[%s336 + $0xa8] sm:$0xff]
        %v652 = vld [vmem:[%s336 + $0xb0] sm:$0xff]
        %v653 = vld [vmem:[%s336 + $0xb8] sm:$0xff]
        %v654 = vld [vmem:[%s336 + $0xc0] sm:$0xff]
        %v655 = vld [vmem:[%s336 + $0xc8] sm:$0xff]
        %v656 = vld [vmem:[%s336 + $0xd0] sm:$0xff]
        %v657 = vld [vmem:[%s336 + $0xd8] sm:$0xff]
        %v658 = vld [vmem:[%s336 + $0xe0] sm:$0xff]
        %v659 = vld [vmem:[%s336 + $0xe8] sm:$0xff]
        %v660 = vld [vmem:[%s336 + $0xf0] sm:$0xff]
        %v661 = vld [vmem:[%s336 + $0xf8] sm:$0xff]
        %v662 = vmul.f32 %v630, %v630
        %v663 = vmul.f32 %v631, %v631
        %v664 = vmul.f32 %v632, %v632
        %v665 = vmul.f32 %v633, %v633
        %v666 = vmul.f32 %v634, %v634
        %v667 = vmul.f32 %v635, %v635
        %v668 = vmul.f32 %v636, %v636
        %v669 = vmul.f32 %v637, %v637
        %v670 = vmul.f32 %v638, %v638
        %v671 = vmul.f32 %v639, %v639
        %v672 = vmul.f32 %v640, %v640
        %v673 = vmul.f32 %v641, %v641
        %v674 = vmul.f32 %v642, %v642
        %v675 = vmul.f32 %v643, %v643
        %v676 = vmul.f32 %v644, %v644
        %v677 = vmul.f32 %v645, %v645
        %v678 = vmul.f32 %v646, %v646
        %v679 = vmul.f32 %v647, %v647
        %v680 = vmul.f32 %v648, %v648
        %v681 = vmul.f32 %v649, %v649
        %v682 = vmul.f32 %v650, %v650
        %v683 = vmul.f32 %v651, %v651
        %v684 = vmul.f32 %v652, %v652
        %v685 = vmul.f32 %v653, %v653
        %v686 = vmul.f32 %v654, %v654
        %v687 = vmul.f32 %v655, %v655
        %v688 = vmul.f32 %v656, %v656
        %v689 = vmul.f32 %v657, %v657
        %v690 = vmul.f32 %v658, %v658
        %v691 = vmul.f32 %v659, %v659
        %v692 = vmul.f32 %v660, %v660
        %v693 = vmul.f32 %v661, %v661
        %v694 = vsub.f32 1.0, %v662
        %v695 = vsub.f32 1.0, %v663
        %v696 = vsub.f32 1.0, %v664
        %v697 = vsub.f32 1.0, %v665
        %v698 = vsub.f32 1.0, %v666
        %v699 = vsub.f32 1.0, %v667
        %v700 = vsub.f32 1.0, %v668
        %v701 = vsub.f32 1.0, %v669
        %v702 = vsub.f32 1.0, %v670
        %v703 = vsub.f32 1.0, %v671
        %v704 = vsub.f32 1.0, %v672
        %v705 = vsub.f32 1.0, %v673
        %v706 = vsub.f32 1.0, %v674
        %v707 = vsub.f32 1.0, %v675
        %v708 = vsub.f32 1.0, %v676
        %v709 = vsub.f32 1.0, %v677
        %v710 = vsub.f32 1.0, %v678
        %v711 = vsub.f32 1.0, %v679
        %v712 = vsub.f32 1.0, %v680
        %v713 = vsub.f32 1.0, %v681
        %v714 = vsub.f32 1.0, %v682
        %v715 = vsub.f32 1.0, %v683
        %v716 = vsub.f32 1.0, %v684
        %v717 = vsub.f32 1.0, %v685
        %v718 = vsub.f32 1.0, %v686
        %v719 = vsub.f32 1.0, %v687
        %v720 = vsub.f32 1.0, %v688
        %v721 = vsub.f32 1.0, %v689
        %v722 = vsub.f32 1.0, %v690
        %v723 = vsub.f32 1.0, %v691
        %v724 = vsub.f32 1.0, %v692
        %v725 = vsub.f32 1.0, %v693
        %v726 = vmul.f32 %v552, %v694
        %v727 = vmul.f32 %v554, %v695
        %v728 = vmul.f32 %v556, %v696
        %v729 = vmul.f32 %v558, %v697
        %v730 = vmul.f32 %v562, %v698
        %v731 = vmul.f32 %v564, %v699
        %v732 = vmul.f32 %v566, %v700
        %v733 = vmul.f32 %v568, %v701
        %v734 = vmul.f32 %v572, %v702
        %v735 = vmul.f32 %v574, %v703
        %v736 = vmul.f32 %v576, %v704
        %v737 = vmul.f32 %v578, %v705
        %v738 = vmul.f32 %v582, %v706
        %v739 = vmul.f32 %v584, %v707
        %v740 = vmul.f32 %v586, %v708
        %v741 = vmul.f32 %v588, %v709
        %v742 = vmul.f32 %v592, %v710
        %v743 = vmul.f32 %v594, %v711
        %v744 = vmul.f32 %v596, %v712
        %v745 = vmul.f32 %v598, %v713
        %v746 = vmul.f32 %v602, %v714
        %v747 = vmul.f32 %v604, %v715
        %v748 = vmul.f32 %v606, %v716
        %v749 = vmul.f32 %v608, %v717
        %v750 = vmul.f32 %v612, %v718
        %v751 = vmul.f32 %v614, %v719
        %v752 = vmul.f32 %v616, %v720
        %v753 = vmul.f32 %v618, %v721
        %v754 = vmul.f32 %v622, %v722
        %v755 = vmul.f32 %v624, %v723
        %v756 = vmul.f32 %v626, %v724
        %v757 = vmul.f32 %v628, %v725
        %v758 = vpack.c.bf16 %v728, %v726
        %v759 = vpack.c.bf16 %v729, %v727
        %v760 = vpack.c.bf16 %v732, %v730
        %v761 = vpack.c.bf16 %v733, %v731
        %v762 = vpack.c.bf16 %v736, %v734
        %v763 = vpack.c.bf16 %v737, %v735
        %v764 = vpack.c.bf16 %v740, %v738
        %v765 = vpack.c.bf16 %v741, %v739
        %v766 = vpack.c.bf16 %v744, %v742
        %v767 = vpack.c.bf16 %v745, %v743
        %v768 = vpack.c.bf16 %v748, %v746
        %v769 = vpack.c.bf16 %v749, %v747
        %v770 = vpack.c.bf16 %v752, %v750
        %v771 = vpack.c.bf16 %v753, %v751
        %v772 = vpack.c.bf16 %v756, %v754
        %v773 = vpack.c.bf16 %v757, %v755
        %v774 = vld [vmem:[#allocation8] sm:$0xff]
        %v775 = vld [vmem:[#allocation8 + $0x8] sm:$0xff]
        %v776 = vld [vmem:[#allocation8 + $0x10] sm:$0xff]
        %v777 = vld [vmem:[#allocation8 + $0x18] sm:$0xff]
        %v778 = vld [vmem:[#allocation8 + $0x20] sm:$0xff]
        %v779 = vld [vmem:[#allocation8 + $0x28] sm:$0xff]
        %v780 = vld [vmem:[#allocation8 + $0x30] sm:$0xff]
        %v781 = vld [vmem:[#allocation8 + $0x38] sm:$0xff]
        %v782 = vld [vmem:[#allocation8 + $0x40] sm:$0xff]
        %v783 = vld [vmem:[#allocation8 + $0x48] sm:$0xff]
        %v784 = vld [vmem:[#allocation8 + $0x50] sm:$0xff]
        %v785 = vld [vmem:[#allocation8 + $0x58] sm:$0xff]
        %v786 = vld [vmem:[#allocation8 + $0x60] sm:$0xff]
        %v787 = vld [vmem:[#allocation8 + $0x68] sm:$0xff]
        %v788 = vld [vmem:[#allocation8 + $0x70] sm:$0xff]
        %v789 = vld [vmem:[#allocation8 + $0x78] sm:$0xff]
        %v790 = vld [vmem:[#allocation8 + $0x80] sm:$0xff]
        %v791 = vld [vmem:[#allocation8 + $0x88] sm:$0xff]
        %v792 = vld [vmem:[#allocation8 + $0x90] sm:$0xff]
        %v793 = vld [vmem:[#allocation8 + $0x98] sm:$0xff]
        %v794 = vld [vmem:[#allocation8 + $0xa0] sm:$0xff]
        %v795 = vld [vmem:[#allocation8 + $0xa8] sm:$0xff]
        %v796 = vld [vmem:[#allocation8 + $0xb0] sm:$0xff]
        %v797 = vld [vmem:[#allocation8 + $0xb8] sm:$0xff]
        %v798 = vld [vmem:[#allocation8 + $0xc0] sm:$0xff]
        %v799 = vld [vmem:[#allocation8 + $0xc8] sm:$0xff]
        %v800 = vld [vmem:[#allocation8 + $0xd0] sm:$0xff]
        %v801 = vld [vmem:[#allocation8 + $0xd8] sm:$0xff]
        %v802 = vld [vmem:[#allocation8 + $0xe0] sm:$0xff]
        %v803 = vld [vmem:[#allocation8 + $0xe8] sm:$0xff]
        %v804 = vld [vmem:[#allocation8 + $0xf0] sm:$0xff]
        %v805 = vld [vmem:[#allocation8 + $0xf8] sm:$0xff]
        %v838 = vunpack.c.l.b16 %v774
        %v839 = vunpack.c.h.b16 %v774
        %v840 = vunpack.c.l.b16 %v775
        %v841 = vunpack.c.h.b16 %v775
        %v842 = vunpack.c.l.b16 %v776
        %v843 = vunpack.c.h.b16 %v776
        %v844 = vunpack.c.l.b16 %v777
        %v845 = vunpack.c.h.b16 %v777
        %v846 = vunpack.c.l.b16 %v778
        %v847 = vunpack.c.h.b16 %v778
        %v848 = vunpack.c.l.b16 %v779
        %v849 = vunpack.c.h.b16 %v779
        %v850 = vunpack.c.l.b16 %v780
        %v851 = vunpack.c.h.b16 %v780
        %v852 = vunpack.c.l.b16 %v781
        %v853 = vunpack.c.h.b16 %v781
        %v854 = vunpack.c.l.b16 %v782
        %v855 = vunpack.c.h.b16 %v782
        %v856 = vunpack.c.l.b16 %v783
        %v857 = vunpack.c.h.b16 %v783
        %v858 = vunpack.c.l.b16 %v784
        %v859 = vunpack.c.h.b16 %v784
        %v860 = vunpack.c.l.b16 %v785
        %v861 = vunpack.c.h.b16 %v785
        %v862 = vunpack.c.l.b16 %v786
        %v863 = vunpack.c.h.b16 %v786
        %v864 = vunpack.c.l.b16 %v787
        %v865 = vunpack.c.h.b16 %v787
        %v866 = vunpack.c.l.b16 %v788
        %v867 = vunpack.c.h.b16 %v788
        %v868 = vunpack.c.l.b16 %v789
        %v869 = vunpack.c.h.b16 %v789
        %v870 = vunpack.c.l.b16 %v790
        %v871 = vunpack.c.h.b16 %v790
        %v872 = vunpack.c.l.b16 %v791
        %v873 = vunpack.c.h.b16 %v791
        %v874 = vunpack.c.l.b16 %v792
        %v875 = vunpack.c.h.b16 %v792
        %v876 = vunpack.c.l.b16 %v793
        %v877 = vunpack.c.h.b16 %v793
        %v878 = vunpack.c.l.b16 %v794
        %v879 = vunpack.c.h.b16 %v794
        %v880 = vunpack.c.l.b16 %v795
        %v881 = vunpack.c.h.b16 %v795
        %v882 = vunpack.c.l.b16 %v796
        %v883 = vunpack.c.h.b16 %v796
        %v884 = vunpack.c.l.b16 %v797
        %v885 = vunpack.c.h.b16 %v797
        %v886 = vunpack.c.l.b16 %v798
        %v887 = vunpack.c.h.b16 %v798
        %v888 = vunpack.c.l.b16 %v799
        %v889 = vunpack.c.h.b16 %v799
        %v890 = vunpack.c.l.b16 %v800
        %v891 = vunpack.c.h.b16 %v800
        %v892 = vunpack.c.l.b16 %v801
        %v893 = vunpack.c.h.b16 %v801
        %v894 = vunpack.c.l.b16 %v802
        %v895 = vunpack.c.h.b16 %v802
        %v896 = vunpack.c.l.b16 %v803
        %v897 = vunpack.c.h.b16 %v803
        %v898 = vunpack.c.l.b16 %v804
        %v899 = vunpack.c.h.b16 %v804
        %v900 = vunpack.c.l.b16 %v805
        %v901 = vunpack.c.h.b16 %v805
        %v902 = vpack.c.b16 %v840, %v838
        %v903 = vpack.c.b16 %v841, %v839
        %v904 = vpack.c.b16 %v844, %v842
        %v905 = vpack.c.b16 %v845, %v843
        %v906 = vpack.c.b16 %v848, %v846
        %v907 = vpack.c.b16 %v849, %v847
        %v908 = vpack.c.b16 %v852, %v850
        %v909 = vpack.c.b16 %v853, %v851
        %v910 = vpack.c.b16 %v856, %v854
        %v911 = vpack.c.b16 %v857, %v855
        %v912 = vpack.c.b16 %v860, %v858
        %v913 = vpack.c.b16 %v861, %v859
        %v914 = vpack.c.b16 %v864, %v862
        %v915 = vpack.c.b16 %v865, %v863
        %v916 = vpack.c.b16 %v868, %v866
        %v917 = vpack.c.b16 %v869, %v867
        %v918 = vpack.c.b16 %v872, %v870
        %v919 = vpack.c.b16 %v873, %v871
        %v920 = vpack.c.b16 %v876, %v874
        %v921 = vpack.c.b16 %v877, %v875
        %v922 = vpack.c.b16 %v880, %v878
        %v923 = vpack.c.b16 %v881, %v879
        %v924 = vpack.c.b16 %v884, %v882
        %v925 = vpack.c.b16 %v885, %v883
        %v926 = vpack.c.b16 %v888, %v886
        %v927 = vpack.c.b16 %v889, %v887
        %v928 = vpack.c.b16 %v892, %v890
        %v929 = vpack.c.b16 %v893, %v891
        %v930 = vpack.c.b16 %v896, %v894
        %v931 = vpack.c.b16 %v897, %v895
        %v932 = vpack.c.b16 %v900, %v898
        %v933 = vpack.c.b16 %v901, %v899
        %966 = vmatprep.subr.bf16.mxu0 %v903
        %967 = vmatpush1.bf16.msra.mxu0 %v902
        %968 = vmatprep.subr.bf16.mxu0 %v905
        %969 = vmatpush1.bf16.msra.mxu0 %v904
        %970 = vmatprep.subr.bf16.mxu0 %v907
        %971 = vmatpush1.bf16.msra.mxu0 %v906
        %972 = vmatprep.subr.bf16.mxu0 %v909
        %973 = vmatpush1.bf16.msra.mxu0 %v908
        %974 = vmatprep.subr.bf16.mxu0 %v911
        %975 = vmatpush1.bf16.msra.mxu0 %v910
        %976 = vmatprep.subr.bf16.mxu0 %v913
        %977 = vmatpush1.bf16.msra.mxu0 %v912
        %978 = vmatprep.subr.bf16.mxu0 %v915
        %979 = vmatpush1.bf16.msra.mxu0 %v914
        %980 = vmatprep.subr.bf16.mxu0 %v917
        %981 = vmatpush1.bf16.msra.mxu0 %v916
        %982 = vmatprep.subr.bf16.mxu0 %v919
        %983 = vmatpush1.bf16.msra.mxu0 %v918
        %984 = vmatprep.subr.bf16.mxu0 %v921
        %985 = vmatpush1.bf16.msra.mxu0 %v920
        %986 = vmatprep.subr.bf16.mxu0 %v923
        %987 = vmatpush1.bf16.msra.mxu0 %v922
        %988 = vmatprep.subr.bf16.mxu0 %v925
        %989 = vmatpush1.bf16.msra.mxu0 %v924
        %990 = vmatprep.subr.bf16.mxu0 %v927
        %991 = vmatpush1.bf16.msra.mxu0 %v926
        %992 = vmatprep.subr.bf16.mxu0 %v929
        %993 = vmatpush1.bf16.msra.mxu0 %v928
        %994 = vmatprep.subr.bf16.mxu0 %v931
        %995 = vmatpush1.bf16.msra.mxu0 %v930
        %996 = vmatprep.subr.bf16.mxu0 %v933
        %997 = vmatpush1.bf16.msra.mxu0 %v932
        %998 = vmatprep.mubr.bf16.mxu0 %v759
        %999 = vmatmul.mubr.bf16.gmra.mrb[0].mxu0 %v758
        %v1000 = vpop.f32.mrb[0].mxu0
        %v1001 = vadd.f32 0.0, %v1000
        %v1002 = vpop.f32.mrb[0].mxu0
        %v1003 = vadd.f32 0.0, %v1002
        %v1004 = vpop.f32.mrb[0].mxu0
        %v1005 = vadd.f32 0.0, %v1004
        %v1006 = vpop.f32.mrb[0].mxu0
        %v1007 = vadd.f32 0.0, %v1006
        %1008 = vmatprep.mubr.bf16.mxu0 %v761
        %1009 = vmatmul.mubr.bf16.gmra.mrb[0].mxu0 %v760
        %v1010 = vpop.f32.mrb[0].mxu0
        %v1011 = vadd.f32 0.0, %v1010
        %v1012 = vpop.f32.mrb[0].mxu0
        %v1013 = vadd.f32 0.0, %v1012
        %v1014 = vpop.f32.mrb[0].mxu0
        %v1015 = vadd.f32 0.0, %v1014
        %v1016 = vpop.f32.mrb[0].mxu0
        %v1017 = vadd.f32 0.0, %v1016
        %1018 = vmatprep.mubr.bf16.mxu0 %v763
        %1019 = vmatmul.mubr.bf16.gmra.mrb[0].mxu0 %v762
        %v1020 = vpop.f32.mrb[0].mxu0
        %v1021 = vadd.f32 0.0, %v1020
        %v1022 = vpop.f32.mrb[0].mxu0
        %v1023 = vadd.f32 0.0, %v1022
        %v1024 = vpop.f32.mrb[0].mxu0
        %v1025 = vadd.f32 0.0, %v1024
        %v1026 = vpop.f32.mrb[0].mxu0
        %v1027 = vadd.f32 0.0, %v1026
        %1028 = vmatprep.mubr.bf16.mxu0 %v765
        %1029 = vmatmul.mubr.bf16.gmra.mrb[0].mxu0 %v764
        %v1030 = vpop.f32.mrb[0].mxu0
        %v1031 = vadd.f32 0.0, %v1030
        %v1032 = vpop.f32.mrb[0].mxu0
        %v1033 = vadd.f32 0.0, %v1032
        %v1034 = vpop.f32.mrb[0].mxu0
        %v1035 = vadd.f32 0.0, %v1034
        %v1036 = vpop.f32.mrb[0].mxu0
        %v1037 = vadd.f32 0.0, %v1036
        %1038 = vmatprep.mubr.bf16.mxu0 %v767
        %1039 = vmatmul.mubr.bf16.gmra.mrb[0].mxu0 %v766
        %v1040 = vpop.f32.mrb[0].mxu0
        %v1041 = vadd.f32 0.0, %v1040
        %v1042 = vpop.f32.mrb[0].mxu0
        %v1043 = vadd.f32 0.0, %v1042
        %v1044 = vpop.f32.mrb[0].mxu0
        %v1045 = vadd.f32 0.0, %v1044
        %v1046 = vpop.f32.mrb[0].mxu0
        %v1047 = vadd.f32 0.0, %v1046
        %1048 = vmatprep.mubr.bf16.mxu0 %v769
        %1049 = vmatmul.mubr.bf16.gmra.mrb[0].mxu0 %v768
        %v1050 = vpop.f32.mrb[0].mxu0
        %v1051 = vadd.f32 0.0, %v1050
        %v1052 = vpop.f32.mrb[0].mxu0
        %v1053 = vadd.f32 0.0, %v1052
        %v1054 = vpop.f32.mrb[0].mxu0
        %v1055 = vadd.f32 0.0, %v1054
        %v1056 = vpop.f32.mrb[0].mxu0
        %v1057 = vadd.f32 0.0, %v1056
        %1058 = vmatprep.mubr.bf16.mxu0 %v771
        %1059 = vmatmul.mubr.bf16.gmra.mrb[0].mxu0 %v770
        %v1060 = vpop.f32.mrb[0].mxu0
        %v1061 = vadd.f32 0.0, %v1060
        %v1062 = vpop.f32.mrb[0].mxu0
        %v1063 = vadd.f32 0.0, %v1062
        %v1064 = vpop.f32.mrb[0].mxu0
        %v1065 = vadd.f32 0.0, %v1064
        %v1066 = vpop.f32.mrb[0].mxu0
        %v1067 = vadd.f32 0.0, %v1066
        %1068 = vmatprep.mubr.bf16.mxu0 %v773
        %1069 = vmatmul.mubr.bf16.gmra.mrb[0].mxu0 %v772
        %v1070 = vpop.f32.mrb[0].mxu0
        %v1071 = vadd.f32 0.0, %v1070
        %v1072 = vpop.f32.mrb[0].mxu0
        %v1073 = vadd.f32 0.0, %v1072
        %v1074 = vpop.f32.mrb[0].mxu0
        %v1075 = vadd.f32 0.0, %v1074
        %v1076 = vpop.f32.mrb[0].mxu0
        %v1077 = vadd.f32 0.0, %v1076
        %1078 = vdwg.mxu0
        %v1079 = vld [vmem:[%s349] sm:$0xff]
        %v1080 = vld [vmem:[%s349 + $0x8] sm:$0xff]
        %v1081 = vld [vmem:[%s349 + $0x10] sm:$0xff]
        %v1082 = vld [vmem:[%s349 + $0x18] sm:$0xff]
        %v1083 = vld [vmem:[%s349 + $0x20] sm:$0xff]
        %v1084 = vld [vmem:[%s349 + $0x28] sm:$0xff]
        %v1085 = vld [vmem:[%s349 + $0x30] sm:$0xff]
        %v1086 = vld [vmem:[%s349 + $0x38] sm:$0xff]
        %v1087 = vld [vmem:[%s349 + $0x40] sm:$0xff]
        %v1088 = vld [vmem:[%s349 + $0x48] sm:$0xff]
        %v1089 = vld [vmem:[%s349 + $0x50] sm:$0xff]
        %v1090 = vld [vmem:[%s349 + $0x58] sm:$0xff]
        %v1091 = vld [vmem:[%s349 + $0x60] sm:$0xff]
        %v1092 = vld [vmem:[%s349 + $0x68] sm:$0xff]
        %v1093 = vld [vmem:[%s349 + $0x70] sm:$0xff]
        %v1094 = vld [vmem:[%s349 + $0x78] sm:$0xff]
        %v1095 = vld [vmem:[%s349 + $0x80] sm:$0xff]
        %v1096 = vld [vmem:[%s349 + $0x88] sm:$0xff]
        %v1097 = vld [vmem:[%s349 + $0x90] sm:$0xff]
        %v1098 = vld [vmem:[%s349 + $0x98] sm:$0xff]
        %v1099 = vld [vmem:[%s349 + $0xa0] sm:$0xff]
        %v1100 = vld [vmem:[%s349 + $0xa8] sm:$0xff]
        %v1101 = vld [vmem:[%s349 + $0xb0] sm:$0xff]
        %v1102 = vld [vmem:[%s349 + $0xb8] sm:$0xff]
        %v1103 = vld [vmem:[%s349 + $0xc0] sm:$0xff]
        %v1104 = vld [vmem:[%s349 + $0xc8] sm:$0xff]
        %v1105 = vld [vmem:[%s349 + $0xd0] sm:$0xff]
        %v1106 = vld [vmem:[%s349 + $0xd8] sm:$0xff]
        %v1107 = vld [vmem:[%s349 + $0xe0] sm:$0xff]
        %v1108 = vld [vmem:[%s349 + $0xe8] sm:$0xff]
        %v1109 = vld [vmem:[%s349 + $0xf0] sm:$0xff]
        %v1110 = vld [vmem:[%s349 + $0xf8] sm:$0xff]
        %v1111 = vmul.f32 %v1079, %v1079
        %v1112 = vmul.f32 %v1080, %v1080
        %v1113 = vmul.f32 %v1081, %v1081
        %v1114 = vmul.f32 %v1082, %v1082
        %v1115 = vmul.f32 %v1083, %v1083
        %v1116 = vmul.f32 %v1084, %v1084
        %v1117 = vmul.f32 %v1085, %v1085
        %v1118 = vmul.f32 %v1086, %v1086
        %v1119 = vmul.f32 %v1087, %v1087
        %v1120 = vmul.f32 %v1088, %v1088
        %v1121 = vmul.f32 %v1089, %v1089
        %v1122 = vmul.f32 %v1090, %v1090
        %v1123 = vmul.f32 %v1091, %v1091
        %v1124 = vmul.f32 %v1092, %v1092
        %v1125 = vmul.f32 %v1093, %v1093
        %v1126 = vmul.f32 %v1094, %v1094
        %v1127 = vmul.f32 %v1095, %v1095
        %v1128 = vmul.f32 %v1096, %v1096
        %v1129 = vmul.f32 %v1097, %v1097
        %v1130 = vmul.f32 %v1098, %v1098
        %v1131 = vmul.f32 %v1099, %v1099
        %v1132 = vmul.f32 %v1100, %v1100
        %v1133 = vmul.f32 %v1101, %v1101
        %v1134 = vmul.f32 %v1102, %v1102
        %v1135 = vmul.f32 %v1103, %v1103
        %v1136 = vmul.f32 %v1104, %v1104
        %v1137 = vmul.f32 %v1105, %v1105
        %v1138 = vmul.f32 %v1106, %v1106
        %v1139 = vmul.f32 %v1107, %v1107
        %v1140 = vmul.f32 %v1108, %v1108
        %v1141 = vmul.f32 %v1109, %v1109
        %v1142 = vmul.f32 %v1110, %v1110
        %v1143 = vsub.f32 1.0, %v1111
        %v1144 = vsub.f32 1.0, %v1112
        %v1145 = vsub.f32 1.0, %v1113
        %v1146 = vsub.f32 1.0, %v1114
        %v1147 = vsub.f32 1.0, %v1115
        %v1148 = vsub.f32 1.0, %v1116
        %v1149 = vsub.f32 1.0, %v1117
        %v1150 = vsub.f32 1.0, %v1118
        %v1151 = vsub.f32 1.0, %v1119
        %v1152 = vsub.f32 1.0, %v1120
        %v1153 = vsub.f32 1.0, %v1121
        %v1154 = vsub.f32 1.0, %v1122
        %v1155 = vsub.f32 1.0, %v1123
        %v1156 = vsub.f32 1.0, %v1124
        %v1157 = vsub.f32 1.0, %v1125
        %v1158 = vsub.f32 1.0, %v1126
        %v1159 = vsub.f32 1.0, %v1127
        %v1160 = vsub.f32 1.0, %v1128
        %v1161 = vsub.f32 1.0, %v1129
        %v1162 = vsub.f32 1.0, %v1130
        %v1163 = vsub.f32 1.0, %v1131
        %v1164 = vsub.f32 1.0, %v1132
        %v1165 = vsub.f32 1.0, %v1133
        %v1166 = vsub.f32 1.0, %v1134
        %v1167 = vsub.f32 1.0, %v1135
        %v1168 = vsub.f32 1.0, %v1136
        %v1169 = vsub.f32 1.0, %v1137
        %v1170 = vsub.f32 1.0, %v1138
        %v1171 = vsub.f32 1.0, %v1139
        %v1172 = vsub.f32 1.0, %v1140
        %v1173 = vsub.f32 1.0, %v1141
        %v1174 = vsub.f32 1.0, %v1142
        %v1175 = vmul.f32 %v1001, %v1143
        %v1176 = vmul.f32 %v1003, %v1144
        %v1177 = vmul.f32 %v1005, %v1145
        %v1178 = vmul.f32 %v1007, %v1146
        %v1179 = vmul.f32 %v1011, %v1147
        %v1180 = vmul.f32 %v1013, %v1148
        %v1181 = vmul.f32 %v1015, %v1149
        %v1182 = vmul.f32 %v1017, %v1150
        %v1183 = vmul.f32 %v1021, %v1151
        %v1184 = vmul.f32 %v1023, %v1152
        %v1185 = vmul.f32 %v1025, %v1153
        %v1186 = vmul.f32 %v1027, %v1154
        %v1187 = vmul.f32 %v1031, %v1155
        %v1188 = vmul.f32 %v1033, %v1156
        %v1189 = vmul.f32 %v1035, %v1157
        %v1190 = vmul.f32 %v1037, %v1158
        %v1191 = vmul.f32 %v1041, %v1159
        %v1192 = vmul.f32 %v1043, %v1160
        %v1193 = vmul.f32 %v1045, %v1161
        %v1194 = vmul.f32 %v1047, %v1162
        %v1195 = vmul.f32 %v1051, %v1163
        %v1196 = vmul.f32 %v1053, %v1164
        %v1197 = vmul.f32 %v1055, %v1165
        %v1198 = vmul.f32 %v1057, %v1166
        %v1199 = vmul.f32 %v1061, %v1167
        %v1200 = vmul.f32 %v1063, %v1168
        %v1201 = vmul.f32 %v1065, %v1169
        %v1202 = vmul.f32 %v1067, %v1170
        %v1203 = vmul.f32 %v1071, %v1171
        %v1204 = vmul.f32 %v1073, %v1172
        %v1205 = vmul.f32 %v1075, %v1173
        %v1206 = vmul.f32 %v1077, %v1174
        %v1207 = vpack.c.bf16 %v1177, %v1175
        %v1208 = vpack.c.bf16 %v1178, %v1176
        %v1209 = vpack.c.bf16 %v1181, %v1179
        %v1210 = vpack.c.bf16 %v1182, %v1180
        %v1211 = vpack.c.bf16 %v1185, %v1183
        %v1212 = vpack.c.bf16 %v1186, %v1184
        %v1213 = vpack.c.bf16 %v1189, %v1187
        %v1214 = vpack.c.bf16 %v1190, %v1188
        %v1215 = vpack.c.bf16 %v1193, %v1191
        %v1216 = vpack.c.bf16 %v1194, %v1192
        %v1217 = vpack.c.bf16 %v1197, %v1195
        %v1218 = vpack.c.bf16 %v1198, %v1196
        %v1219 = vpack.c.bf16 %v1201, %v1199
        %v1220 = vpack.c.bf16 %v1202, %v1200
        %v1221 = vpack.c.bf16 %v1205, %v1203
        %v1222 = vpack.c.bf16 %v1206, %v1204
        %v1223 = vld [vmem:[#allocation11] sm:$0xf]
        %v1224 = vld [vmem:[#allocation11 + $0x4] sm:$0xf]
        %v1225 = vld [vmem:[#allocation11 + $0x8] sm:$0xf]
        %v1226 = vld [vmem:[#allocation11 + $0xc] sm:$0xf]
        %v1227 = vld [vmem:[#allocation11 + $0x10] sm:$0xf]
        %v1228 = vld [vmem:[#allocation11 + $0x14] sm:$0xf]
        %v1229 = vld [vmem:[#allocation11 + $0x18] sm:$0xf]
        %v1230 = vld [vmem:[#allocation11 + $0x1c] sm:$0xf]
        %v1231 = vld [vmem:[#allocation11 + $0x20] sm:$0xf]
        %v1232 = vld [vmem:[#allocation11 + $0x24] sm:$0xf]
        %v1233 = vld [vmem:[#allocation11 + $0x28] sm:$0xf]
        %v1234 = vld [vmem:[#allocation11 + $0x2c] sm:$0xf]
        %v1235 = vld [vmem:[#allocation11 + $0x30] sm:$0xf]
        %v1236 = vld [vmem:[#allocation11 + $0x34] sm:$0xf]
        %v1237 = vld [vmem:[#allocation11 + $0x38] sm:$0xf]
        %v1238 = vld [vmem:[#allocation11 + $0x3c] sm:$0xf]
        %v1239 = vld [vmem:[#allocation11 + $0x40] sm:$0xf]
        %v1240 = vld [vmem:[#allocation11 + $0x44] sm:$0xf]
        %v1241 = vld [vmem:[#allocation11 + $0x48] sm:$0xf]
        %v1242 = vld [vmem:[#allocation11 + $0x4c] sm:$0xf]
        %v1243 = vld [vmem:[#allocation11 + $0x50] sm:$0xf]
        %v1244 = vld [vmem:[#allocation11 + $0x54] sm:$0xf]
        %v1245 = vld [vmem:[#allocation11 + $0x58] sm:$0xf]
        %v1246 = vld [vmem:[#allocation11 + $0x5c] sm:$0xf]
        %v1247 = vld [vmem:[#allocation11 + $0x60] sm:$0xf]
        %v1248 = vld [vmem:[#allocation11 + $0x64] sm:$0xf]
        %v1249 = vld [vmem:[#allocation11 + $0x68] sm:$0xf]
        %v1250 = vld [vmem:[#allocation11 + $0x6c] sm:$0xf]
        %v1251 = vld [vmem:[#allocation11 + $0x70] sm:$0xf]
        %v1252 = vld [vmem:[#allocation11 + $0x74] sm:$0xf]
        %v1253 = vld [vmem:[#allocation11 + $0x78] sm:$0xf]
        %v1254 = vld [vmem:[#allocation11 + $0x7c] sm:$0xf]
        %v1287 = vunpack.c.l.b16 %v1223
        %v1288 = vunpack.c.l.b16 %v1224
        %v1289 = vunpack.c.l.b16 %v1225
        %v1290 = vunpack.c.l.b16 %v1226
        %v1291 = vunpack.c.l.b16 %v1227
        %v1292 = vunpack.c.l.b16 %v1228
        %v1293 = vunpack.c.l.b16 %v1229
        %v1294 = vunpack.c.l.b16 %v1230
        %v1295 = vunpack.c.l.b16 %v1231
        %v1296 = vunpack.c.l.b16 %v1232
        %v1297 = vunpack.c.l.b16 %v1233
        %v1298 = vunpack.c.l.b16 %v1234
        %v1299 = vunpack.c.l.b16 %v1235
        %v1300 = vunpack.c.l.b16 %v1236
        %v1301 = vunpack.c.l.b16 %v1237
        %v1302 = vunpack.c.l.b16 %v1238
        %v1303 = vunpack.c.l.b16 %v1239
        %v1304 = vunpack.c.l.b16 %v1240
        %v1305 = vunpack.c.l.b16 %v1241
        %v1306 = vunpack.c.l.b16 %v1242
        %v1307 = vunpack.c.l.b16 %v1243
        %v1308 = vunpack.c.l.b16 %v1244
        %v1309 = vunpack.c.l.b16 %v1245
        %v1310 = vunpack.c.l.b16 %v1246
        %v1311 = vunpack.c.l.b16 %v1247
        %v1312 = vunpack.c.l.b16 %v1248
        %v1313 = vunpack.c.l.b16 %v1249
        %v1314 = vunpack.c.l.b16 %v1250
        %v1315 = vunpack.c.l.b16 %v1251
        %v1316 = vunpack.c.l.b16 %v1252
        %v1317 = vunpack.c.l.b16 %v1253
        %v1318 = vunpack.c.l.b16 %v1254
        %v1319 = vpack.c.b16 %v1288, %v1287
        %v1320 = vpack.c.b16 %v1290, %v1289
        %v1321 = vpack.c.b16 %v1292, %v1291
        %v1322 = vpack.c.b16 %v1294, %v1293
        %v1323 = vpack.c.b16 %v1296, %v1295
        %v1324 = vpack.c.b16 %v1298, %v1297
        %v1325 = vpack.c.b16 %v1300, %v1299
        %v1326 = vpack.c.b16 %v1302, %v1301
        %v1327 = vpack.c.b16 %v1304, %v1303
        %v1328 = vpack.c.b16 %v1306, %v1305
        %v1329 = vpack.c.b16 %v1308, %v1307
        %v1330 = vpack.c.b16 %v1310, %v1309
        %v1331 = vpack.c.b16 %v1312, %v1311
        %v1332 = vpack.c.b16 %v1314, %v1313
        %v1333 = vpack.c.b16 %v1316, %v1315
        %v1334 = vpack.c.b16 %v1318, %v1317
        %1351 = vmatprep.subr.bf16.mxu0 0
        %1352 = vmatpush1.bf16.msra.mxu0 %v1319
        %1353 = vmatprep.subr.bf16.mxu0 0
        %1354 = vmatpush1.bf16.msra.mxu0 %v1320
        %1355 = vmatprep.subr.bf16.mxu0 0
        %1356 = vmatpush1.bf16.msra.mxu0 %v1321
        %1357 = vmatprep.subr.bf16.mxu0 0
        %1358 = vmatpush1.bf16.msra.mxu0 %v1322
        %1359 = vmatprep.subr.bf16.mxu0 0
        %1360 = vmatpush1.bf16.msra.mxu0 %v1323
        %1361 = vmatprep.subr.bf16.mxu0 0
        %1362 = vmatpush1.bf16.msra.mxu0 %v1324
        %1363 = vmatprep.subr.bf16.mxu0 0
        %1364 = vmatpush1.bf16.msra.mxu0 %v1325
        %1365 = vmatprep.subr.bf16.mxu0 0
        %1366 = vmatpush1.bf16.msra.mxu0 %v1326
        %1367 = vmatprep.subr.bf16.mxu0 0
        %1368 = vmatpush1.bf16.msra.mxu0 %v1327
        %1369 = vmatprep.subr.bf16.mxu0 0
        %1370 = vmatpush1.bf16.msra.mxu0 %v1328
        %1371 = vmatprep.subr.bf16.mxu0 0
        %1372 = vmatpush1.bf16.msra.mxu0 %v1329
        %1373 = vmatprep.subr.bf16.mxu0 0
        %1374 = vmatpush1.bf16.msra.mxu0 %v1330
        %1375 = vmatprep.subr.bf16.mxu0 0
        %1376 = vmatpush1.bf16.msra.mxu0 %v1331
        %1377 = vmatprep.subr.bf16.mxu0 0
        %1378 = vmatpush1.bf16.msra.mxu0 %v1332
        %1379 = vmatprep.subr.bf16.mxu0 0
        %1380 = vmatpush1.bf16.msra.mxu0 %v1333
        %1381 = vmatprep.subr.bf16.mxu0 0
        %1382 = vmatpush1.bf16.msra.mxu0 %v1334
        %1383 = vmatprep.mubr.bf16.mxu0 %v1208
        %1384 = vmatmul.mubr.bf16.gmra.mrb[0].mxu0 %v1207
        %v1385 = vpop.f32.mrb[0].mxu0
        %v1386 = vadd.f32 0.0, %v1385
        %v1387 = vpop.f32.mrb[0].mxu0
        %v1388 = vpop.f32.mrb[0].mxu0
        %v1389 = vadd.f32 0.0, %v1388
        %v1390 = vpop.f32.mrb[0].mxu0
        %1391 = vmatprep.mubr.bf16.mxu0 %v1210
        %1392 = vmatmul.mubr.bf16.gmra.mrb[0].mxu0 %v1209
        %v1393 = vpop.f32.mrb[0].mxu0
        %v1394 = vadd.f32 0.0, %v1393
        %v1395 = vpop.f32.mrb[0].mxu0
        %v1396 = vpop.f32.mrb[0].mxu0
        %v1397 = vadd.f32 0.0, %v1396
        %v1398 = vpop.f32.mrb[0].mxu0
        %1399 = vmatprep.mubr.bf16.mxu0 %v1212
        %1400 = vmatmul.mubr.bf16.gmra.mrb[0].mxu0 %v1211
        %v1401 = vpop.f32.mrb[0].mxu0
        %v1402 = vadd.f32 0.0, %v1401
        %v1403 = vpop.f32.mrb[0].mxu0
        %v1404 = vpop.f32.mrb[0].mxu0
        %v1405 = vadd.f32 0.0, %v1404
        %v1406 = vpop.f32.mrb[0].mxu0
        %1407 = vmatprep.mubr.bf16.mxu0 %v1214
        %1408 = vmatmul.mubr.bf16.gmra.mrb[0].mxu0 %v1213
        %v1409 = vpop.f32.mrb[0].mxu0
        %v1410 = vadd.f32 0.0, %v1409
        %v1411 = vpop.f32.mrb[0].mxu0
        %v1412 = vpop.f32.mrb[0].mxu0
        %v1413 = vadd.f32 0.0, %v1412
        %v1414 = vpop.f32.mrb[0].mxu0
        %1415 = vmatprep.mubr.bf16.mxu0 %v1216
        %1416 = vmatmul.mubr.bf16.gmra.mrb[0].mxu0 %v1215
        %v1417 = vpop.f32.mrb[0].mxu0
        %v1418 = vadd.f32 0.0, %v1417
        %v1419 = vpop.f32.mrb[0].mxu0
        %v1420 = vpop.f32.mrb[0].mxu0
        %v1421 = vadd.f32 0.0, %v1420
        %v1422 = vpop.f32.mrb[0].mxu0
        %1423 = vmatprep.mubr.bf16.mxu0 %v1218
        %1424 = vmatmul.mubr.bf16.gmra.mrb[0].mxu0 %v1217
        %v1425 = vpop.f32.mrb[0].mxu0
        %v1426 = vadd.f32 0.0, %v1425
        %v1427 = vpop.f32.mrb[0].mxu0
        %v1428 = vpop.f32.mrb[0].mxu0
        %v1429 = vadd.f32 0.0, %v1428
        %v1430 = vpop.f32.mrb[0].mxu0
        %1431 = vmatprep.mubr.bf16.mxu0 %v1220
        %1432 = vmatmul.mubr.bf16.gmra.mrb[0].mxu0 %v1219
        %v1433 = vpop.f32.mrb[0].mxu0
        %v1434 = vadd.f32 0.0, %v1433
        %v1435 = vpop.f32.mrb[0].mxu0
        %v1436 = vpop.f32.mrb[0].mxu0
        %v1437 = vadd.f32 0.0, %v1436
        %v1438 = vpop.f32.mrb[0].mxu0
        %1439 = vmatprep.mubr.bf16.mxu0 %v1222
        %1440 = vmatmul.mubr.bf16.gmra.mrb[0].mxu0 %v1221
        %v1441 = vpop.f32.mrb[0].mxu0
        %v1442 = vadd.f32 0.0, %v1441
        %v1443 = vpop.f32.mrb[0].mxu0
        %v1444 = vpop.f32.mrb[0].mxu0
        %v1445 = vadd.f32 0.0, %v1444
        %v1446 = vpop.f32.mrb[0].mxu0
        %1447 = vdwg.mxu0
        %1448 = vst [vmem:[%s391] sm:$0xff] %v1386
        %1449 = vst [vmem:[%s391 + $0x8] sm:$0xff] %v1389
        %1450 = vst [vmem:[%s391 + $0x10] sm:$0xff] %v1394
        %1451 = vst [vmem:[%s391 + $0x18] sm:$0xff] %v1397
        %1452 = vst [vmem:[%s391 + $0x20] sm:$0xff] %v1402
        %1453 = vst [vmem:[%s391 + $0x28] sm:$0xff] %v1405
        %1454 = vst [vmem:[%s391 + $0x30] sm:$0xff] %v1410
        %1455 = vst [vmem:[%s391 + $0x38] sm:$0xff] %v1413
        %1456 = vst [vmem:[%s391 + $0x40] sm:$0xff] %v1418
        %1457 = vst [vmem:[%s391 + $0x48] sm:$0xff] %v1421
        %1458 = vst [vmem:[%s391 + $0x50] sm:$0xff] %v1426
        %1459 = vst [vmem:[%s391 + $0x58] sm:$0xff] %v1429
        %1460 = vst [vmem:[%s391 + $0x60] sm:$0xff] %v1434
        %1461 = vst [vmem:[%s391 + $0x68] sm:$0xff] %v1437
        %1462 = vst [vmem:[%s391 + $0x70] sm:$0xff] %v1442
        %1463 = vst [vmem:[%s391 + $0x78] sm:$0xff] %v1445
        %s1464 = sand.u32 %s176, 1
        %s1465 = scalar_lea.sflag [#allocation4], %s1464
        %s1466 = sand.u32 %s176, 1
        %s1467 = smul.addr %s1466, 128
        %s1468 = scalar_lea.vmem [#allocation12], %s1467
        // Predicated region
        $region69: #{tpu_custom_call.1} parent=43 // pred_check
          %p1469 = pneg %p186
        $region70: #{tpu_custom_call.1} parent=43 // pred_check_branch
          %1471 = sbr.rel (%p1469) target = $region72
        $region71: #{tpu_custom_call.1} parent=43 // pred_region
          %s1472 = smul.u32 16, %s27
          %s1474 = ssub.s32 2048, 2048
          %1475 = vsyncadd %s1465, %s1474
          %s1476 = smul.addr %s1472, 128
          %s1477 = scalar_lea.hbm %s6, %s1476
          %s1478 = sshll.u32 %s1468, 4
          %s1479 = int_to_ptr.vmem [resolvable:$true] %s1478
          %1484 = dma.vmem_to_hbm [thread:$0]  %s1479, 2048, %s1477, %s1465, 128, 128, 8
        $region72: #{tpu_custom_call.1} parent=43 // pred_fallthru
          _
      $region44: #{tpu_custom_call.1} parent=5 // pred_fallthru
        _
      %p1485 = scmp.le.s32.totalorder 2, %s22
      // Predicated region
      $region73: #{tpu_custom_call.1} parent=5 // pred_check
        %p1486 = pneg %p1485
      $region74: #{tpu_custom_call.1} parent=5 // pred_check_branch
        %1488 = sbr.rel (%p1486) target = $region76
      $region75: #{tpu_custom_call.1} parent=5 // pred_region
        %s1489 = ssub.s32 %s22, 2
        // Predicated region
        $region77: #{tpu_custom_call.1} parent=75 // pred_check
          %p1490 = pneg %p192
        $region78: #{tpu_custom_call.1} parent=75 // pred_check_branch
          %1492 = sbr.rel (%p1490) target = $region80
        $region79: #{tpu_custom_call.1} parent=75 // pred_region
          %s1493 = sand.u32 %s177, 1
          %s1494 = scalar_lea.sflag [#allocation4], %s1493
          %s1495 = sand.u32 %s177, 1
          %s1496 = smul.addr %s1495, 128
          %s1497 = scalar_lea.vmem [#allocation12], %s1496
          %1498 = dma.done %s1494, 2048
        $region80: #{tpu_custom_call.1} parent=75 // pred_fallthru
          _
      $region76: #{tpu_custom_call.1} parent=5 // pred_fallthru
        _
    $region6: #{tpu_custom_call.1} parent=1 // loop_footer
      %s26 = sadd.s32 1, %s22
    $region7: #{tpu_custom_call.1} parent=1 // loop_footer_branch
      %21 = sbr.rel target = $region3
    $region8: #{tpu_custom_call.1} parent=1 // loop_exit
      _
    %1499 = vsyncpa [#allocation3], 1
    %s1500 = scalar_lea.sflag [#allocation3], 1
    %1501 = vsyncpa %s1500, 1
    %1502 = vsyncpa [#allocation6], 1
    %1503 = vsyncpa [#allocation10], 1
    %s1504 = scalar_lea.sflag [#allocation10], 1
    %1505 = vsyncpa %s1504, 1
    %1506 = vsyncpa [#allocation4], 1
    %s1507 = scalar_lea.sflag [#allocation4], 1
    %1508 = vsyncpa %s1507, 1

</llo_original>
